<compile_context>
chip_gen: v7x
topology: tpu7x:2x2x1
jax: 0.10.0
libtpu: 0.0.40
codegen_flags: <defaults>
</compile_context>

<pallas_src>
import math

import jax
import jax.numpy as jnp
from jax.experimental import pallas as pl
from jax.experimental.pallas import tpu as pltpu


# ----------------------------- Pallas kernel --------------------------------

def _make_stsgcl_kernel(num_layers, B, N, out_dims):
    """Fused STSGCM for one sliding window: chained GCN(GLU) + middle-slice max."""
    S = 3  # strides / local window length

    def kernel(*refs):
        a_refs = refs[0:S]                                # each (B, 1, N, N)   bf16
        x_refs = refs[S:2 * S]                            # each (B, 1, N, Cin) bf16
        w_refs = refs[2 * S:2 * S + 2 * num_layers]
        out_ref = refs[2 * S + 2 * num_layers]            # (1, B, N, Cout)     f32

        # Hoisted once per grid step (outside the unrolled layer loop).
        a = [a_refs[s][...].reshape(B, N, N) for s in range(S)]          # bf16, diag == 1
        h = [x_refs[s][...].reshape(B, N, -1).astype(jnp.float32)
             for s in range(S)]                                          # f32 features

        acc = None
        for li in range(num_layers):
            w_p = w_refs[2 * li][0]                       # (C_in, 2*Co) bf16
            b_p = w_refs[2 * li + 1][0]                   # (1, 2*Co)    f32
            co = out_dims[li]

            hb = [h[s].astype(jnp.bfloat16) for s in range(S)]   # bf16 MXU operands
            hf = [hb[s].astype(jnp.float32) for s in range(S)]   # f32 neighbor adds
            c = hb[0].shape[-1]

            g = []
            for s in range(S):
                # Diagonal block of the local ST graph: batched bf16 MXU matmul, f32 acc.
                ys = jnp.einsum('bnm,bmc->bnc', a[s], hb[s],
                                preferred_element_type=jnp.float32)      # (B, N, c)
                # Off-diagonal identity blocks (adjacent time steps): cheap VPU adds.
                if s > 0:
                    ys = ys + hf[s - 1]
                if s < S - 1:
                    ys = ys + hf[s + 1]

                # Fused FC for both GLU halves: one MXU matmul per time step.
                z = jnp.dot(ys.astype(jnp.bfloat16).reshape(B * N, c), w_p,
                            preferred_element_type=jnp.float32) + b_p    # (B*N, 2*co)
                gs = z[:, :co] * jax.nn.sigmoid(z[:, co:])               # GLU in f32
                g.append(gs.reshape(B, N, co))

            mid = g[1]                                    # middle time step (B, N, co)
            acc = mid if acc is None else jnp.maximum(acc, mid)

            h = g                                         # input to next layer

        out_ref[0] = acc

    return kernel


def stsgcl_pallas(adj, x, stacked_params, out_dims, B, T, N):
    """adj: (B, T, N, N) bf16 (diag==1), x: (B, T, N, Cin) bf16,
    stacked_params: per layer ((W, C_in, 2*Co) bf16, (W, 1, 2*Co) f32)."""
    S = 3
    W = T - S + 1
    Cin = x.shape[-1]
    num_layers = len(out_dims)
    # max over per-layer middle slices requires equal channel counts (as in the module)
    assert all(d == out_dims[-1] for d in out_dims)
    Cout = out_dims[-1]

    kernel = _make_stsgcl_kernel(num_layers, B, N, out_dims)

    in_specs = []
    # Three overlapping time-step views of the SAME HBM arrays: window w reads
    # time steps w, w+1, w+2 (no windowed duplication in HBM).
    for o in range(S):
        in_specs.append(pl.BlockSpec((B, 1, N, N), lambda w, o=o: (0, w + o, 0, 0)))
    for o in range(S):
        in_specs.append(pl.BlockSpec((B, 1, N, Cin), lambda w, o=o: (0, w + o, 0, 0)))

    flat_params = []
    for (wp, bp) in stacked_params:
        in_specs.append(pl.BlockSpec((1,) + wp.shape[1:], lambda w: (w, 0, 0)))
        in_specs.append(pl.BlockSpec((1,) + bp.shape[1:], lambda w: (w, 0, 0)))
        flat_params += [wp, bp]

    out_specs = pl.BlockSpec((1, B, N, Cout), lambda w: (w, 0, 0, 0))

    # NOTE: at realistic STSGCN sizes (N in the hundreds) set
    # pltpu.CompilerParams(vmem_limit_bytes=...) and re-budget the double-buffered
    # (B, N, N) adjacency blocks against v7x's 64 MiB VMEM.
    return pl.pallas_call(
        kernel,
        grid=(W,),
        in_specs=in_specs,
        out_specs=out_specs,
        out_shape=jax.ShapeDtypeStruct((W, B, N, Cout), jnp.float32),
        compiler_params=pltpu.CompilerParams(
            dimension_semantics=("parallel",)),  # windows independent -> megacore on v7x
    )(adj, adj, adj, x, x, x, *flat_params)


# ------------------------------- glue (JAX) ----------------------------------

def construct_adj_optimized(adj):
    """(B, S, N, N) -> (B, S*N, S*N) local spatio-temporal adjacency.

    # TODO(synk): construct_adj_optimized was not provided with the reference;
    # standard STSGCN construction assumed: per-step adjacency on the diagonal
    # blocks, identity between adjacent time steps, ones on the main diagonal.
    """
    B, S, N, _ = adj.shape
    eye = jnp.eye(N, dtype=adj.dtype)
    big = jnp.zeros((B, S * N, S * N), dtype=adj.dtype)
    for k in range(S):
        big = big.at[:, k * N:(k + 1) * N, k * N:(k + 1) * N].set(adj[:, k])
    for k in range(S - 1):
        big = big.at[:, k * N:(k + 1) * N, (k + 1) * N:(k + 2) * N].set(eye)
        big = big.at[:, (k + 1) * N:(k + 2) * N, k * N:(k + 1) * N].set(eye)
    idx = jnp.arange(S * N)
    big = big.at[:, idx, idx].set(1.0)
    return big


def init_stsgcl_params(key, history, num_vertices, in_dim, out_dims, strides=3):
    """Deterministic synthetic parameter init (shapes match the PyTorch module)."""
    num_windows = history - strides + 1
    keys = jax.random.split(key, 2 + num_windows)

    fan_in_t, fan_out_t = history * in_dim, in_dim
    std_t = 0.0003 * math.sqrt(2.0 / (fan_in_t + fan_out_t))
    temporal_emb = std_t * jax.random.normal(keys[0], (1, history, 1, in_dim), jnp.float32)

    fan_s = num_vertices * in_dim
    std_s = 0.0003 * math.sqrt(2.0 / (2 * fan_s))
    spatial_emb = std_s * jax.random.normal(keys[1], (1, 1, num_vertices, in_dim), jnp.float32)

    stsgcms = []
    for w in range(num_windows):
        lkeys = jax.random.split(keys[2 + w], len(out_dims) * 2)
        layers = []
        cur_in = in_dim
        for li, cout in enumerate(out_dims):
            bound = 1.0 / math.sqrt(cur_in)
            wfull = jax.random.uniform(lkeys[2 * li], (cur_in, 2 * cout),
                                       jnp.float32, -bound, bound)
            bfull = jax.random.uniform(lkeys[2 * li + 1], (1, 2 * cout),
                                       jnp.float32, -bound, bound)
            layers.append((wfull, bfull))
            cur_in = cout
        stsgcms.append(layers)

    return {"temporal_embedding": temporal_emb,
            "spatial_embedding": spatial_emb,
            "stsgcms": stsgcms}


def stsgcl_forward(params, x, adj, mask=None, strides=3):
    """x: (B, T, N, Cin), adj: (B, T, N, N) -> (B, T-strides+1, N, Cout)."""
    if mask is not None:
        # TODO(synk): the optional mask multiplies the dense (B, 3N, 3N) adjacency;
        # the structured-adjacency fast path does not express it.
        raise NotImplementedError("mask is not supported by the Pallas fast path")

    x = x + params["temporal_embedding"]
    x = x + params["spatial_embedding"]
    B, T, N, Cin = x.shape
    out_dims = [w.shape[-1] // 2 for (w, _) in params["stsgcms"][0]]
    num_windows = T - strides + 1

    # adjacency with main diagonal forced to 1 (construct_adj_optimized diag rule);
    # bf16 MXU inputs (accumulation & element-wise math stay f32 inside the kernel)
    di = jnp.arange(N)
    adj_d1 = adj.at[:, :, di, di].set(1.0).astype(jnp.bfloat16)
    x_bf = x.astype(jnp.bfloat16)

    # per-layer weights stacked over windows: (W, C_in, 2*Cout) / (W, 1, 2*Cout)
    stacked = []
    for l in range(len(out_dims)):
        wl = jnp.stack([params["stsgcms"][w][l][0] for w in range(num_windows)], 0)
        bl = jnp.stack([params["stsgcms"][w][l][1] for w in range(num_windows)], 0)
        stacked.append((wl.astype(jnp.bfloat16), bl))

    out = stsgcl_pallas(adj_d1, x_bf, stacked, out_dims, B, T, N)  # (W, B, N, Cout)
    return jnp.transpose(out, (1, 0, 2, 3))                        # (B, W, N, Cout)


# -------------------------- pure-JAX reference -------------------------------
# Mirrors the PyTorch module (dense construct_adj form) with the same bf16 MXU
# input casts as the kernel, f32 accumulation, f32 GLU.

def _stsgcm_ref(adj_big, x, layer_params, N):
    bf = jnp.bfloat16
    h = x
    acc = None
    for (wfull, bfull) in layer_params:
        y = jnp.einsum('bnm,bmc->bnc', adj_big.astype(bf), h.astype(bf),
                       preferred_element_type=jnp.float32)
        z = jnp.einsum('bnc,cd->bnd', y.astype(bf), wfull.astype(bf),
                       preferred_element_type=jnp.float32) + bfull
        co = wfull.shape[-1] // 2
        h = z[..., :co] * jax.nn.sigmoid(z[..., co:])
        mid = h[:, N:2 * N, :]
        acc = mid if acc is None else jnp.maximum(acc, mid)
    return acc


def stsgcl_ref(params, x, adj, mask=None, strides=3):
    x = x + params["temporal_embedding"]
    x = x + params["spatial_embedding"]
    B, T, N, Cin = x.shape
    outs = []
    for i in range(T - strides + 1):
        t = x[:, i:i + strides].reshape(B, strides * N, Cin)
        adj_big = construct_adj_optimized(adj[:, i:i + strides])
        if mask is not None:
            adj_big = adj_big * mask
        outs.append(_stsgcm_ref(adj_big, t, params["stsgcms"][i], N)[:, None])
    return jnp.concatenate(outs, axis=1)


# ---------------------------------- main --------------------------------------

if __name__ == "__main__":
    B, T, N, Cin = 2, 8, 16, 4
    out_dims = [32, 32]
    strides = 3

    key = jax.random.PRNGKey(0)
    k_param, k_x, k_adj = jax.random.split(key, 3)

    params = init_stsgcl_params(k_param, history=T, num_vertices=N,
                                in_dim=Cin, out_dims=out_dims, strides=strides)

    x = jax.random.normal(k_x, (B, T, N, Cin), jnp.float32)
    adj = jax.random.uniform(k_adj, (B, T, N, N), jnp.float32)

    out = jax.block_until_ready(stsgcl_forward(params, x, adj, mask=None, strides=strides))
    ref = jax.block_until_ready(stsgcl_ref(params, x, adj, mask=None, strides=strides))

    assert out.shape == (B, T - strides + 1, N, out_dims[-1]), out.shape
    # bf16 MXU inputs in both kernel and reference; tolerance covers bf16-level
    # rounding / accumulation-order noise between the structured and dense forms.
    assert jnp.allclose(out, ref, rtol=5e-2, atol=5e-2), \
        f"max abs diff {jnp.max(jnp.abs(out - ref))}"

    print("KERNEL_OK")
</pallas_src>

<mosaic_0001>
module attributes {stable_mosaic.version = 11 : i64} {
  func.func @kernel(%arg0: i32, %arg1: memref<2x1x16x16xbf16, #tpu.memory_space<vmem>>, %arg2: memref<2x1x16x16xbf16, #tpu.memory_space<vmem>>, %arg3: memref<2x1x16x16xbf16, #tpu.memory_space<vmem>>, %arg4: memref<2x1x16x4xbf16, #tpu.memory_space<vmem>>, %arg5: memref<2x1x16x4xbf16, #tpu.memory_space<vmem>>, %arg6: memref<2x1x16x4xbf16, #tpu.memory_space<vmem>>, %arg7: memref<1x4x64xbf16, #tpu.memory_space<vmem>>, %arg8: memref<1x1x64xf32, #tpu.memory_space<vmem>>, %arg9: memref<1x32x64xbf16, #tpu.memory_space<vmem>>, %arg10: memref<1x1x64xf32, #tpu.memory_space<vmem>>, %arg11: memref<1x2x16x32xf32, #tpu.memory_space<vmem>>) attributes {dimension_semantics = [#tpu.dimension_semantics<parallel>], iteration_bounds = array<i64: 6>, scalar_prefetch = 0 : i64, scratch_operands = 0 : i64, tpu.core_type = #tpu.core_type<tc>, window_params = [{transform_indices = @transform_0, window_bounds = array<i64: 2, 1, 16, 16>}, {transform_indices = @transform_1, window_bounds = array<i64: 2, 1, 16, 16>}, {transform_indices = @transform_2, window_bounds = array<i64: 2, 1, 16, 16>}, {transform_indices = @transform_3, window_bounds = array<i64: 2, 1, 16, 4>}, {transform_indices = @transform_4, window_bounds = array<i64: 2, 1, 16, 4>}, {transform_indices = @transform_5, window_bounds = array<i64: 2, 1, 16, 4>}, {transform_indices = @transform_6, window_bounds = array<i64: 1, 4, 64>}, {transform_indices = @transform_7, window_bounds = array<i64: 1, 1, 64>}, {transform_indices = @transform_8, window_bounds = array<i64: 1, 32, 64>}, {transform_indices = @transform_9, window_bounds = array<i64: 1, 1, 64>}, {transform_indices = @transform_10, window_bounds = array<i64: 1, 2, 16, 32>}]} {
    %c0 = arith.constant 0 : index
    %c0_0 = arith.constant 0 : index
    %c0_1 = arith.constant 0 : index
    %c0_2 = arith.constant 0 : index
    %0 = vector.load %arg1[%c0, %c0_0, %c0_1, %c0_2] : memref<2x1x16x16xbf16, #tpu.memory_space<vmem>>, vector<2x1x16x16xbf16>
    %1 = vector.shape_cast %0 : vector<2x1x16x16xbf16> to vector<2x16x16xbf16>
    %c0_3 = arith.constant 0 : index
    %c0_4 = arith.constant 0 : index
    %c0_5 = arith.constant 0 : index
    %c0_6 = arith.constant 0 : index
    %2 = vector.load %arg2[%c0_3, %c0_4, %c0_5, %c0_6] : memref<2x1x16x16xbf16, #tpu.memory_space<vmem>>, vector<2x1x16x16xbf16>
    %3 = vector.shape_cast %2 : vector<2x1x16x16xbf16> to vector<2x16x16xbf16>
    %c0_7 = arith.constant 0 : index
    %c0_8 = arith.constant 0 : index
    %c0_9 = arith.constant 0 : index
    %c0_10 = arith.constant 0 : index
    %4 = vector.load %arg3[%c0_7, %c0_8, %c0_9, %c0_10] : memref<2x1x16x16xbf16, #tpu.memory_space<vmem>>, vector<2x1x16x16xbf16>
    %5 = vector.shape_cast %4 : vector<2x1x16x16xbf16> to vector<2x16x16xbf16>
    %c0_11 = arith.constant 0 : index
    %c0_12 = arith.constant 0 : index
    %c0_13 = arith.constant 0 : index
    %c0_14 = arith.constant 0 : index
    %6 = vector.load %arg4[%c0_11, %c0_12, %c0_13, %c0_14] : memref<2x1x16x4xbf16, #tpu.memory_space<vmem>>, vector<2x1x16x4xbf16>
    %7 = vector.shape_cast %6 : vector<2x1x16x4xbf16> to vector<2x16x4xbf16>
    %8 = arith.extf %7 : vector<2x16x4xbf16> to vector<2x16x4xf32>
    %c0_15 = arith.constant 0 : index
    %c0_16 = arith.constant 0 : index
    %c0_17 = arith.constant 0 : index
    %c0_18 = arith.constant 0 : index
    %9 = vector.load %arg5[%c0_15, %c0_16, %c0_17, %c0_18] : memref<2x1x16x4xbf16, #tpu.memory_space<vmem>>, vector<2x1x16x4xbf16>
    %10 = vector.shape_cast %9 : vector<2x1x16x4xbf16> to vector<2x16x4xbf16>
    %11 = arith.extf %10 : vector<2x16x4xbf16> to vector<2x16x4xf32>
    %c0_19 = arith.constant 0 : index
    %c0_20 = arith.constant 0 : index
    %c0_21 = arith.constant 0 : index
    %c0_22 = arith.constant 0 : index
    %12 = vector.load %arg6[%c0_19, %c0_20, %c0_21, %c0_22] : memref<2x1x16x4xbf16, #tpu.memory_space<vmem>>, vector<2x1x16x4xbf16>
    %13 = vector.shape_cast %12 : vector<2x1x16x4xbf16> to vector<2x16x4xbf16>
    %14 = arith.extf %13 : vector<2x16x4xbf16> to vector<2x16x4xf32>
    %c0_23 = arith.constant 0 : index
    %c0_24 = arith.constant 0 : index
    %c0_25 = arith.constant 0 : index
    %15 = vector.load %arg7[%c0_23, %c0_24, %c0_25] : memref<1x4x64xbf16, #tpu.memory_space<vmem>>, vector<1x4x64xbf16>
    %16 = vector.shape_cast %15 : vector<1x4x64xbf16> to vector<4x64xbf16>
    %c0_26 = arith.constant 0 : index
    %c0_27 = arith.constant 0 : index
    %c0_28 = arith.constant 0 : index
    %17 = vector.load %arg8[%c0_26, %c0_27, %c0_28] : memref<1x1x64xf32, #tpu.memory_space<vmem>>, vector<1x1x64xf32>
    %18 = vector.shape_cast %17 : vector<1x1x64xf32> to vector<1x64xf32>
    %19 = arith.truncf %8 : vector<2x16x4xf32> to vector<2x16x4xbf16>
    %20 = arith.truncf %11 : vector<2x16x4xf32> to vector<2x16x4xbf16>
    %21 = arith.truncf %14 : vector<2x16x4xf32> to vector<2x16x4xbf16>
    %22 = arith.extf %19 : vector<2x16x4xbf16> to vector<2x16x4xf32>
    %23 = arith.extf %20 : vector<2x16x4xbf16> to vector<2x16x4xf32>
    %24 = arith.extf %21 : vector<2x16x4xbf16> to vector<2x16x4xf32>
    "tpu.trace_start"() <{level = 10 : i32, message = "bnm,bmc->bnc"}> : () -> ()
    %cst = arith.constant dense<0.000000e+00> : vector<2x16x4xf32>
    %25 = tpu.matmul %1, %19, %cst {dimension_numbers = #tpu.dot_dimension_numbers<[2], [1], [1], [2], [0, 0, 0, 1, 1, 2], [0], [0]>} : vector<2x16x16xbf16>, vector<2x16x4xbf16>, vector<2x16x4xf32> -> vector<2x16x4xf32>
    "tpu.trace_stop"() : () -> ()
    %26 = arith.addf %25, %23 : vector<2x16x4xf32>
    %27 = arith.truncf %26 : vector<2x16x4xf32> to vector<2x16x4xbf16>
    %28 = vector.shape_cast %27 : vector<2x16x4xbf16> to vector<32x4xbf16>
    %cst_29 = arith.constant dense<0.000000e+00> : vector<32x64xf32>
    %29 = tpu.matmul %28, %16, %cst_29 {dimension_numbers = #tpu.dot_dimension_numbers<[1], [0], [0], [1], [0, 0, 1, 1], [], []>} : vector<32x4xbf16>, vector<4x64xbf16>, vector<32x64xf32> -> vector<32x64xf32>
    %30 = vector.broadcast %18 : vector<1x64xf32> to vector<32x64xf32>
    %31 = arith.addf %29, %30 : vector<32x64xf32>
    %32 = vector.extract_strided_slice %31 {offsets = [0, 0], sizes = [32, 32], strides = [1, 1]} : vector<32x64xf32> to vector<32x32xf32>
    %33 = vector.extract_strided_slice %31 {offsets = [0, 32], sizes = [32, 32], strides = [1, 1]} : vector<32x64xf32> to vector<32x32xf32>
    %34 = arith.negf %33 : vector<32x32xf32>
    %35 = math.exp %34 : vector<32x32xf32>
    %cst_30 = arith.constant 1.000000e+00 : f32
    %36 = vector.broadcast %cst_30 : f32 to vector<32x32xf32>
    %37 = arith.addf %36, %35 : vector<32x32xf32>
    %38 = arith.divf %36, %37 : vector<32x32xf32>
    %39 = arith.mulf %32, %38 : vector<32x32xf32>
    %40 = vector.shape_cast %39 : vector<32x32xf32> to vector<2x16x32xf32>
    "tpu.trace_start"() <{level = 10 : i32, message = "bnm,bmc->bnc"}> : () -> ()
    %cst_31 = arith.constant dense<0.000000e+00> : vector<2x16x4xf32>
    %41 = tpu.matmul %3, %20, %cst_31 {dimension_numbers = #tpu.dot_dimension_numbers<[2], [1], [1], [2], [0, 0, 0, 1, 1, 2], [0], [0]>} : vector<2x16x16xbf16>, vector<2x16x4xbf16>, vector<2x16x4xf32> -> vector<2x16x4xf32>
    "tpu.trace_stop"() : () -> ()
    %42 = arith.addf %41, %22 : vector<2x16x4xf32>
    %43 = arith.addf %42, %24 : vector<2x16x4xf32>
    %44 = arith.truncf %43 : vector<2x16x4xf32> to vector<2x16x4xbf16>
    %45 = vector.shape_cast %44 : vector<2x16x4xbf16> to vector<32x4xbf16>
    %cst_32 = arith.constant dense<0.000000e+00> : vector<32x64xf32>
    %46 = tpu.matmul %45, %16, %cst_32 {dimension_numbers = #tpu.dot_dimension_numbers<[1], [0], [0], [1], [0, 0, 1, 1], [], []>} : vector<32x4xbf16>, vector<4x64xbf16>, vector<32x64xf32> -> vector<32x64xf32>
    %47 = vector.broadcast %18 : vector<1x64xf32> to vector<32x64xf32>
    %48 = arith.addf %46, %47 : vector<32x64xf32>
    %49 = vector.extract_strided_slice %48 {offsets = [0, 0], sizes = [32, 32], strides = [1, 1]} : vector<32x64xf32> to vector<32x32xf32>
    %50 = vector.extract_strided_slice %48 {offsets = [0, 32], sizes = [32, 32], strides = [1, 1]} : vector<32x64xf32> to vector<32x32xf32>
    %51 = arith.negf %50 : vector<32x32xf32>
    %52 = math.exp %51 : vector<32x32xf32>
    %cst_33 = arith.constant 1.000000e+00 : f32
    %53 = vector.broadcast %cst_33 : f32 to vector<32x32xf32>
    %54 = arith.addf %53, %52 : vector<32x32xf32>
    %55 = arith.divf %53, %54 : vector<32x32xf32>
    %56 = arith.mulf %49, %55 : vector<32x32xf32>
    %57 = vector.shape_cast %56 : vector<32x32xf32> to vector<2x16x32xf32>
    "tpu.trace_start"() <{level = 10 : i32, message = "bnm,bmc->bnc"}> : () -> ()
    %cst_34 = arith.constant dense<0.000000e+00> : vector<2x16x4xf32>
    %58 = tpu.matmul %5, %21, %cst_34 {dimension_numbers = #tpu.dot_dimension_numbers<[2], [1], [1], [2], [0, 0, 0, 1, 1, 2], [0], [0]>} : vector<2x16x16xbf16>, vector<2x16x4xbf16>, vector<2x16x4xf32> -> vector<2x16x4xf32>
    "tpu.trace_stop"() : () -> ()
    %59 = arith.addf %58, %23 : vector<2x16x4xf32>
    %60 = arith.truncf %59 : vector<2x16x4xf32> to vector<2x16x4xbf16>
    %61 = vector.shape_cast %60 : vector<2x16x4xbf16> to vector<32x4xbf16>
    %cst_35 = arith.constant dense<0.000000e+00> : vector<32x64xf32>
    %62 = tpu.matmul %61, %16, %cst_35 {dimension_numbers = #tpu.dot_dimension_numbers<[1], [0], [0], [1], [0, 0, 1, 1], [], []>} : vector<32x4xbf16>, vector<4x64xbf16>, vector<32x64xf32> -> vector<32x64xf32>
    %63 = vector.broadcast %18 : vector<1x64xf32> to vector<32x64xf32>
    %64 = arith.addf %62, %63 : vector<32x64xf32>
    %65 = vector.extract_strided_slice %64 {offsets = [0, 0], sizes = [32, 32], strides = [1, 1]} : vector<32x64xf32> to vector<32x32xf32>
    %66 = vector.extract_strided_slice %64 {offsets = [0, 32], sizes = [32, 32], strides = [1, 1]} : vector<32x64xf32> to vector<32x32xf32>
    %67 = arith.negf %66 : vector<32x32xf32>
    %68 = math.exp %67 : vector<32x32xf32>
    %cst_36 = arith.constant 1.000000e+00 : f32
    %69 = vector.broadcast %cst_36 : f32 to vector<32x32xf32>
    %70 = arith.addf %69, %68 : vector<32x32xf32>
    %71 = arith.divf %69, %70 : vector<32x32xf32>
    %72 = arith.mulf %65, %71 : vector<32x32xf32>
    %73 = vector.shape_cast %72 : vector<32x32xf32> to vector<2x16x32xf32>
    %c0_37 = arith.constant 0 : index
    %c0_38 = arith.constant 0 : index
    %c0_39 = arith.constant 0 : index
    %74 = vector.load %arg9[%c0_37, %c0_38, %c0_39] : memref<1x32x64xbf16, #tpu.memory_space<vmem>>, vector<1x32x64xbf16>
    %75 = vector.shape_cast %74 : vector<1x32x64xbf16> to vector<32x64xbf16>
    %c0_40 = arith.constant 0 : index
    %c0_41 = arith.constant 0 : index
    %c0_42 = arith.constant 0 : index
    %76 = vector.load %arg10[%c0_40, %c0_41, %c0_42] : memref<1x1x64xf32, #tpu.memory_space<vmem>>, vector<1x1x64xf32>
    %77 = vector.shape_cast %76 : vector<1x1x64xf32> to vector<1x64xf32>
    %78 = arith.truncf %40 : vector<2x16x32xf32> to vector<2x16x32xbf16>
    %79 = arith.truncf %57 : vector<2x16x32xf32> to vector<2x16x32xbf16>
    %80 = arith.truncf %73 : vector<2x16x32xf32> to vector<2x16x32xbf16>
    %81 = arith.extf %78 : vector<2x16x32xbf16> to vector<2x16x32xf32>
    %82 = arith.extf %80 : vector<2x16x32xbf16> to vector<2x16x32xf32>
    "tpu.trace_start"() <{level = 10 : i32, message = "bnm,bmc->bnc"}> : () -> ()
    %cst_43 = arith.constant dense<0.000000e+00> : vector<2x16x32xf32>
    %83 = tpu.matmul %3, %79, %cst_43 {dimension_numbers = #tpu.dot_dimension_numbers<[2], [1], [1], [2], [0, 0, 0, 1, 1, 2], [0], [0]>} : vector<2x16x16xbf16>, vector<2x16x32xbf16>, vector<2x16x32xf32> -> vector<2x16x32xf32>
    "tpu.trace_stop"() : () -> ()
    %84 = arith.addf %83, %81 : vector<2x16x32xf32>
    %85 = arith.addf %84, %82 : vector<2x16x32xf32>
    %86 = arith.truncf %85 : vector<2x16x32xf32> to vector<2x16x32xbf16>
    %87 = vector.shape_cast %86 : vector<2x16x32xbf16> to vector<32x32xbf16>
    %cst_44 = arith.constant dense<0.000000e+00> : vector<32x64xf32>
    %88 = tpu.matmul %87, %75, %cst_44 {dimension_numbers = #tpu.dot_dimension_numbers<[1], [0], [0], [1], [0, 0, 1, 1], [], []>} : vector<32x32xbf16>, vector<32x64xbf16>, vector<32x64xf32> -> vector<32x64xf32>
    %89 = vector.broadcast %77 : vector<1x64xf32> to vector<32x64xf32>
    %90 = arith.addf %88, %89 : vector<32x64xf32>
    %91 = vector.extract_strided_slice %90 {offsets = [0, 0], sizes = [32, 32], strides = [1, 1]} : vector<32x64xf32> to vector<32x32xf32>
    %92 = vector.extract_strided_slice %90 {offsets = [0, 32], sizes = [32, 32], strides = [1, 1]} : vector<32x64xf32> to vector<32x32xf32>
    %93 = arith.negf %92 : vector<32x32xf32>
    %94 = math.exp %93 : vector<32x32xf32>
    %cst_45 = arith.constant 1.000000e+00 : f32
    %95 = vector.broadcast %cst_45 : f32 to vector<32x32xf32>
    %96 = arith.addf %95, %94 : vector<32x32xf32>
    %97 = arith.divf %95, %96 : vector<32x32xf32>
    %98 = arith.mulf %91, %97 : vector<32x32xf32>
    %99 = vector.shape_cast %98 : vector<32x32xf32> to vector<2x16x32xf32>
    %100 = arith.maximumf %57, %99 : vector<2x16x32xf32>
    %c0_46 = arith.constant 0 : index
    %c0_47 = arith.constant 0 : index
    %c0_48 = arith.constant 0 : index
    %c0_49 = arith.constant 0 : index
    %101 = vector.load %arg11[%c0_46, %c0_47, %c0_48, %c0_49] : memref<1x2x16x32xf32, #tpu.memory_space<vmem>>, vector<1x2x16x32xf32>
    %102 = vector.shape_cast %101 : vector<1x2x16x32xf32> to vector<2x16x32xf32>
    %103 = vector.shape_cast %100 : vector<2x16x32xf32> to vector<1x2x16x32xf32>
    tpu.vector_store %arg11[%c0_46, %c0_47, %c0_48, %c0_49], %103 {strides = array<i32>} : memref<1x2x16x32xf32, #tpu.memory_space<vmem>>, vector<1x2x16x32xf32>,
    return
  }
  func.func @transform_0(%arg0: i32) -> (i32, i32, i32, i32) {
    %c0_i32 = arith.constant 0 : i32
    %0 = arith.addi %arg0, %c0_i32 : i32
    %c0_i32_0 = arith.constant 0 : i32
    %c0_i32_1 = arith.constant 0 : i32
    %c0_i32_2 = arith.constant 0 : i32
    %c0_i32_3 = arith.constant 0 : i32
    return %c0_i32_0, %0, %c0_i32_1, %c0_i32_2 : i32, i32, i32, i32
  }
  func.func @transform_1(%arg0: i32) -> (i32, i32, i32, i32) {
    %c1_i32 = arith.constant 1 : i32
    %0 = arith.addi %arg0, %c1_i32 : i32
    %c0_i32 = arith.constant 0 : i32
    %c0_i32_0 = arith.constant 0 : i32
    %c0_i32_1 = arith.constant 0 : i32
    %c0_i32_2 = arith.constant 0 : i32
    return %c0_i32, %0, %c0_i32_0, %c0_i32_1 : i32, i32, i32, i32
  }
  func.func @transform_2(%arg0: i32) -> (i32, i32, i32, i32) {
    %c2_i32 = arith.constant 2 : i32
    %0 = arith.addi %arg0, %c2_i32 : i32
    %c0_i32 = arith.constant 0 : i32
    %c0_i32_0 = arith.constant 0 : i32
    %c0_i32_1 = arith.constant 0 : i32
    %c0_i32_2 = arith.constant 0 : i32
    return %c0_i32, %0, %c0_i32_0, %c0_i32_1 : i32, i32, i32, i32
  }
  func.func @transform_3(%arg0: i32) -> (i32, i32, i32, i32) {
    %c0_i32 = arith.constant 0 : i32
    %0 = arith.addi %arg0, %c0_i32 : i32
    %c0_i32_0 = arith.constant 0 : i32
    %c0_i32_1 = arith.constant 0 : i32
    %c0_i32_2 = arith.constant 0 : i32
    %c0_i32_3 = arith.constant 0 : i32
    return %c0_i32_0, %0, %c0_i32_1, %c0_i32_2 : i32, i32, i32, i32
  }
  func.func @transform_4(%arg0: i32) -> (i32, i32, i32, i32) {
    %c1_i32 = arith.constant 1 : i32
    %0 = arith.addi %arg0, %c1_i32 : i32
    %c0_i32 = arith.constant 0 : i32
    %c0_i32_0 = arith.constant 0 : i32
    %c0_i32_1 = arith.constant 0 : i32
    %c0_i32_2 = arith.constant 0 : i32
    return %c0_i32, %0, %c0_i32_0, %c0_i32_1 : i32, i32, i32, i32
  }
  func.func @transform_5(%arg0: i32) -> (i32, i32, i32, i32) {
    %c2_i32 = arith.constant 2 : i32
    %0 = arith.addi %arg0, %c2_i32 : i32
    %c0_i32 = arith.constant 0 : i32
    %c0_i32_0 = arith.constant 0 : i32
    %c0_i32_1 = arith.constant 0 : i32
    %c0_i32_2 = arith.constant 0 : i32
    return %c0_i32, %0, %c0_i32_0, %c0_i32_1 : i32, i32, i32, i32
  }
  func.func @transform_6(%arg0: i32) -> (i32, i32, i32) {
    %c0_i32 = arith.constant 0 : i32
    %c0_i32_0 = arith.constant 0 : i32
    %c0_i32_1 = arith.constant 0 : i32
    return %arg0, %c0_i32, %c0_i32_0 : i32, i32, i32
  }
  func.func @transform_7(%arg0: i32) -> (i32, i32, i32) {
    %c0_i32 = arith.constant 0 : i32
    %c0_i32_0 = arith.constant 0 : i32
    %c0_i32_1 = arith.constant 0 : i32
    return %arg0, %c0_i32, %c0_i32_0 : i32, i32, i32
  }
  func.func @transform_8(%arg0: i32) -> (i32, i32, i32) {
    %c0_i32 = arith.constant 0 : i32
    %c0_i32_0 = arith.constant 0 : i32
    %c0_i32_1 = arith.constant 0 : i32
    return %arg0, %c0_i32, %c0_i32_0 : i32, i32, i32
  }
  func.func @transform_9(%arg0: i32) -> (i32, i32, i32) {
    %c0_i32 = arith.constant 0 : i32
    %c0_i32_0 = arith.constant 0 : i32
    %c0_i32_1 = arith.constant 0 : i32
    return %arg0, %c0_i32, %c0_i32_0 : i32, i32, i32
  }
  func.func @transform_10(%arg0: i32) -> (i32, i32, i32, i32) {
    %c0_i32 = arith.constant 0 : i32
    %c0_i32_0 = arith.constant 0 : i32
    %c0_i32_1 = arith.constant 0 : i32
    %c0_i32_2 = arith.constant 0 : i32
    return %arg0, %c0_i32, %c0_i32_0, %c0_i32_1 : i32, i32, i32, i32
  }
}

</mosaic_0001>

<llo_original>
// kernel: tpu_custom_call.1
$region0: #{tpu_custom_call.1}
  #allocation0 [shape = 'u32[]', space=smem, size = 0x4, offset = 0x4, fixed_abs, tag = 'smem constant byte address 0x4 - core index']
  #allocation1 [shape = 'u32[144,128]{1,0:T(1,128)}', space=vmem, size = 0x12000, scoped, tag = 'internal scratch']
  %s0 = inlined_call_operand.vmem [shape: bf16[2,8,16,16], index: 0, kind: input, shape index: {}]
  %s1 = inlined_call_operand.vmem [shape: bf16[2,8,16,16], index: 1, kind: input, shape index: {}]
  %s2 = inlined_call_operand.vmem [shape: bf16[2,8,16,16], index: 2, kind: input, shape index: {}]
  %s3 = inlined_call_operand.vmem [shape: bf16[2,8,16,4], index: 3, kind: input, shape index: {}]
  %s4 = inlined_call_operand.vmem [shape: bf16[2,8,16,4], index: 4, kind: input, shape index: {}]
  %s5 = inlined_call_operand.vmem [shape: bf16[2,8,16,4], index: 5, kind: input, shape index: {}]
  %s6 = inlined_call_operand.vmem [shape: bf16[6,4,64], index: 6, kind: input, shape index: {}]
  %s7 = inlined_call_operand.vmem [shape: f32[6,1,64], index: 7, kind: input, shape index: {}]
  %s8 = inlined_call_operand.vmem [shape: bf16[6,32,64], index: 8, kind: input, shape index: {}]
  %s9 = inlined_call_operand.vmem [shape: f32[6,1,64], index: 9, kind: input, shape index: {}]
  %s10 = inlined_call_operand.hbm [shape: f32[6,2,16,32], index: 10, kind: output, shape index: {}]
  %s11 = sld [smem:[#allocation0]]
  $region319: #{tpu_custom_call.1} parent=0
    _
  %s13 = ssub.s32 1, %s11
  %s14 = scalar_select 0, %s13, %s11
  $region1: #{tpu_custom_call.1} parent=0
    #allocation2 [shape = 'u8[16384]{0}', space=vmem, size = 0x4000, scoped, tag = 'input window, operand 0']
    #allocation3 [shape = 'u8[16384]{0}', space=vmem, size = 0x4000, scoped, tag = 'input window, operand 1']
    #allocation4 [shape = 'u8[16384]{0}', space=vmem, size = 0x4000, scoped, tag = 'input window, operand 2']
    #allocation5 [shape = 'u8[16384]{0}', space=vmem, size = 0x4000, scoped, tag = 'input window, operand 3']
    #allocation6 [shape = 'u8[16384]{0}', space=vmem, size = 0x4000, scoped, tag = 'input window, operand 4']
    #allocation7 [shape = 'u8[16384]{0}', space=vmem, size = 0x4000, scoped, tag = 'input window, operand 5']
    #allocation8 [shape = 'u8[32768]{0}', space=vmem, size = 0x8000, scoped, tag = 'output window, operand 0']
    #allocation9 [shape = 's32[2]{0}', space=sflag, size = 0x8, scoped, tag = 'scoped memory for tpu_custom_call.1']
    %15 = vsyncpa [#allocation9], 0
    %s16 = scalar_lea.sflag [#allocation9], 1
    %17 = vsyncpa %s16, 0
    loop: start=0, step=1, limit=8
    $region2: #{tpu_custom_call.1} parent=1 // loop_pre_header
      _
    $region3: #{tpu_custom_call.1} parent=1 // loop_header
      %s19 = sphi 0, %s23
      %p20 = scmp.ge.s32.totalorder %s19, 8
      %s29 = sphi 0, %s31
      %s32 = sphi 0, %s29
      %s33 = sphi 0, %s32
      %s49 = sphi 0, %s33
      %s57 = sphi 0, %s59
      %s60 = sphi 0, %s57
      %s61 = sphi 0, %s60
      %s77 = sphi 0, %s61
      %s85 = sphi 0, %s87
      %s88 = sphi 0, %s85
      %s89 = sphi 0, %s88
      %s105 = sphi 0, %s89
      %s111 = sphi 0, %s113
      %s114 = sphi 0, %s111
      %s115 = sphi 0, %s114
      %s131 = sphi 0, %s115
      %s139 = sphi 0, %s141
      %s142 = sphi 0, %s139
      %s143 = sphi 0, %s142
      %s159 = sphi 0, %s143
      %s167 = sphi 0, %s169
      %s170 = sphi 0, %s167
      %s171 = sphi 0, %s170
      %s187 = sphi 0, %s171
      %s193 = sphi 0, %s195
      %s196 = sphi 0, %s193
      %s197 = sphi 0, %s196
      %s213 = sphi 0, %s197
      %s219 = sphi 0, %s221
      %s222 = sphi 0, %s219
      %s223 = sphi 0, %s222
      %s239 = sphi 0, %s223
      %s245 = sphi 0, %s247
      %s248 = sphi 0, %s245
      %s249 = sphi 0, %s248
      %s265 = sphi 0, %s249
      %s271 = sphi 0, %s273
      %s274 = sphi 0, %s271
      %s275 = sphi 0, %s274
      %s291 = sphi 0, %s275
      %s297 = sphi 0, %s299
      %s300 = sphi 0, %s297
      %s301 = sphi 0, %s300
      %s317 = sphi 0, %s301
    $region4: #{tpu_custom_call.1} parent=1 // loop_header_branch
      %22 = sbr.rel (%p20) target = $region8
    $region5: #{tpu_custom_call.1} parent=1 // loop_body
      %s24 = ssub.s32 %s19, 1
      %s25 = ssub.s32 %s19, 2
      %s26 = sadd.s32 %s19, 1
      %s27 = ssub.s32 %s19, %s26
      %p28 = scmp.eq.s32.totalorder %s27, 0
      %s30 = sadd.s32 %s29, 1
      %s31 = scalar_select %p28, %s29, %s30
      %p34 = pneg %p28
      %p35 = scmp.eq.s32.totalorder %s19, 5
      %p36 = por %p34, %p35
      %p37 = scmp.ne.s32.totalorder %s29, %s32
      %p38 = scmp.eq.s32.totalorder %s19, 0
      %p39 = por %p37, %p38
      %p40 = scmp.ne.s32.totalorder %s29, %s32
      %p41 = scmp.eq.s32.totalorder %s24, 5
      %p42 = por %p40, %p41
      %p43 = scmp.ne.s32.totalorder %s32, %s33
      %p44 = scmp.eq.s32.totalorder %s24, 0
      %p45 = por %p43, %p44
      %p46 = scmp.ne.s32.totalorder %s32, %s33
      %p47 = scmp.eq.s32.totalorder %s25, 5
      %p48 = por %p46, %p47
      %p50 = scmp.ne.s32.totalorder %s33, %s49
      %p51 = scmp.eq.s32.totalorder %s25, 0
      %p52 = por %p50, %p51
      %s53 = sadd.s32 %s19, 1
      %s54 = sadd.s32 %s26, 1
      %s55 = ssub.s32 %s53, %s54
      %p56 = scmp.eq.s32.totalorder %s55, 0
      %s58 = sadd.s32 %s57, 1
      %s59 = scalar_select %p56, %s57, %s58
      %p62 = pneg %p56
      %p63 = scmp.eq.s32.totalorder %s19, 5
      %p64 = por %p62, %p63
      %p65 = scmp.ne.s32.totalorder %s57, %s60
      %p66 = scmp.eq.s32.totalorder %s19, 0
      %p67 = por %p65, %p66
      %p68 = scmp.ne.s32.totalorder %s57, %s60
      %p69 = scmp.eq.s32.totalorder %s24, 5
      %p70 = por %p68, %p69
      %p71 = scmp.ne.s32.totalorder %s60, %s61
      %p72 = scmp.eq.s32.totalorder %s24, 0
      %p73 = por %p71, %p72
      %p74 = scmp.ne.s32.totalorder %s60, %s61
      %p75 = scmp.eq.s32.totalorder %s25, 5
      %p76 = por %p74, %p75
      %p78 = scmp.ne.s32.totalorder %s61, %s77
      %p79 = scmp.eq.s32.totalorder %s25, 0
      %p80 = por %p78, %p79
      %s81 = sadd.s32 %s19, 2
      %s82 = sadd.s32 %s26, 2
      %s83 = ssub.s32 %s81, %s82
      %p84 = scmp.eq.s32.totalorder %s83, 0
      %s86 = sadd.s32 %s85, 1
      %s87 = scalar_select %p84, %s85, %s86
      %p90 = pneg %p84
      %p91 = scmp.eq.s32.totalorder %s19, 5
      %p92 = por %p90, %p91
      %p93 = scmp.ne.s32.totalorder %s85, %s88
      %p94 = scmp.eq.s32.totalorder %s19, 0
      %p95 = por %p93, %p94
      %p96 = scmp.ne.s32.totalorder %s85, %s88
      %p97 = scmp.eq.s32.totalorder %s24, 5
      %p98 = por %p96, %p97
      %p99 = scmp.ne.s32.totalorder %s88, %s89
      %p100 = scmp.eq.s32.totalorder %s24, 0
      %p101 = por %p99, %p100
      %p102 = scmp.ne.s32.totalorder %s88, %s89
      %p103 = scmp.eq.s32.totalorder %s25, 5
      %p104 = por %p102, %p103
      %p106 = scmp.ne.s32.totalorder %s89, %s105
      %p107 = scmp.eq.s32.totalorder %s25, 0
      %p108 = por %p106, %p107
      %s109 = ssub.s32 %s19, %s26
      %p110 = scmp.eq.s32.totalorder %s109, 0
      %s112 = sadd.s32 %s111, 1
      %s113 = scalar_select %p110, %s111, %s112
      %p116 = pneg %p110
      %p117 = scmp.eq.s32.totalorder %s19, 5
      %p118 = por %p116, %p117
      %p119 = scmp.ne.s32.totalorder %s111, %s114
      %p120 = scmp.eq.s32.totalorder %s19, 0
      %p121 = por %p119, %p120
      %p122 = scmp.ne.s32.totalorder %s111, %s114
      %p123 = scmp.eq.s32.totalorder %s24, 5
      %p124 = por %p122, %p123
      %p125 = scmp.ne.s32.totalorder %s114, %s115
      %p126 = scmp.eq.s32.totalorder %s24, 0
      %p127 = por %p125, %p126
      %p128 = scmp.ne.s32.totalorder %s114, %s115
      %p129 = scmp.eq.s32.totalorder %s25, 5
      %p130 = por %p128, %p129
      %p132 = scmp.ne.s32.totalorder %s115, %s131
      %p133 = scmp.eq.s32.totalorder %s25, 0
      %p134 = por %p132, %p133
      %s135 = sadd.s32 %s19, 1
      %s136 = sadd.s32 %s26, 1
      %s137 = ssub.s32 %s135, %s136
      %p138 = scmp.eq.s32.totalorder %s137, 0
      %s140 = sadd.s32 %s139, 1
      %s141 = scalar_select %p138, %s139, %s140
      %p144 = pneg %p138
      %p145 = scmp.eq.s32.totalorder %s19, 5
      %p146 = por %p144, %p145
      %p147 = scmp.ne.s32.totalorder %s139, %s142
      %p148 = scmp.eq.s32.totalorder %s19, 0
      %p149 = por %p147, %p148
      %p150 = scmp.ne.s32.totalorder %s139, %s142
      %p151 = scmp.eq.s32.totalorder %s24, 5
      %p152 = por %p150, %p151
      %p153 = scmp.ne.s32.totalorder %s142, %s143
      %p154 = scmp.eq.s32.totalorder %s24, 0
      %p155 = por %p153, %p154
      %p156 = scmp.ne.s32.totalorder %s142, %s143
      %p157 = scmp.eq.s32.totalorder %s25, 5
      %p158 = por %p156, %p157
      %p160 = scmp.ne.s32.totalorder %s143, %s159
      %p161 = scmp.eq.s32.totalorder %s25, 0
      %p162 = por %p160, %p161
      %s163 = sadd.s32 %s19, 2
      %s164 = sadd.s32 %s26, 2
      %s165 = ssub.s32 %s163, %s164
      %p166 = scmp.eq.s32.totalorder %s165, 0
      %s168 = sadd.s32 %s167, 1
      %s169 = scalar_select %p166, %s167, %s168
      %p172 = pneg %p166
      %p173 = scmp.eq.s32.totalorder %s19, 5
      %p174 = por %p172, %p173
      %p175 = scmp.ne.s32.totalorder %s167, %s170
      %p176 = scmp.eq.s32.totalorder %s19, 0
      %p177 = por %p175, %p176
      %p178 = scmp.ne.s32.totalorder %s167, %s170
      %p179 = scmp.eq.s32.totalorder %s24, 5
      %p180 = por %p178, %p179
      %p181 = scmp.ne.s32.totalorder %s170, %s171
      %p182 = scmp.eq.s32.totalorder %s24, 0
      %p183 = por %p181, %p182
      %p184 = scmp.ne.s32.totalorder %s170, %s171
      %p185 = scmp.eq.s32.totalorder %s25, 5
      %p186 = por %p184, %p185
      %p188 = scmp.ne.s32.totalorder %s171, %s187
      %p189 = scmp.eq.s32.totalorder %s25, 0
      %p190 = por %p188, %p189
      %s191 = ssub.s32 %s19, %s26
      %p192 = scmp.eq.s32.totalorder %s191, 0
      %s194 = sadd.s32 %s193, 1
      %s195 = scalar_select %p192, %s193, %s194
      %p198 = pneg %p192
      %p199 = scmp.eq.s32.totalorder %s19, 5
      %p200 = por %p198, %p199
      %p201 = scmp.ne.s32.totalorder %s193, %s196
      %p202 = scmp.eq.s32.totalorder %s19, 0
      %p203 = por %p201, %p202
      %p204 = scmp.ne.s32.totalorder %s193, %s196
      %p205 = scmp.eq.s32.totalorder %s24, 5
      %p206 = por %p204, %p205
      %p207 = scmp.ne.s32.totalorder %s196, %s197
      %p208 = scmp.eq.s32.totalorder %s24, 0
      %p209 = por %p207, %p208
      %p210 = scmp.ne.s32.totalorder %s196, %s197
      %p211 = scmp.eq.s32.totalorder %s25, 5
      %p212 = por %p210, %p211
      %p214 = scmp.ne.s32.totalorder %s197, %s213
      %p215 = scmp.eq.s32.totalorder %s25, 0
      %p216 = por %p214, %p215
      %s217 = ssub.s32 %s19, %s26
      %p218 = scmp.eq.s32.totalorder %s217, 0
      %s220 = sadd.s32 %s219, 1
      %s221 = scalar_select %p218, %s219, %s220
      %p224 = pneg %p218
      %p225 = scmp.eq.s32.totalorder %s19, 5
      %p226 = por %p224, %p225
      %p227 = scmp.ne.s32.totalorder %s219, %s222
      %p228 = scmp.eq.s32.totalorder %s19, 0
      %p229 = por %p227, %p228
      %p230 = scmp.ne.s32.totalorder %s219, %s222
      %p231 = scmp.eq.s32.totalorder %s24, 5
      %p232 = por %p230, %p231
      %p233 = scmp.ne.s32.totalorder %s222, %s223
      %p234 = scmp.eq.s32.totalorder %s24, 0
      %p235 = por %p233, %p234
      %p236 = scmp.ne.s32.totalorder %s222, %s223
      %p237 = scmp.eq.s32.totalorder %s25, 5
      %p238 = por %p236, %p237
      %p240 = scmp.ne.s32.totalorder %s223, %s239
      %p241 = scmp.eq.s32.totalorder %s25, 0
      %p242 = por %p240, %p241
      %s243 = ssub.s32 %s19, %s26
      %p244 = scmp.eq.s32.totalorder %s243, 0
      %s246 = sadd.s32 %s245, 1
      %s247 = scalar_select %p244, %s245, %s246
      %p250 = pneg %p244
      %p251 = scmp.eq.s32.totalorder %s19, 5
      %p252 = por %p250, %p251
      %p253 = scmp.ne.s32.totalorder %s245, %s248
      %p254 = scmp.eq.s32.totalorder %s19, 0
      %p255 = por %p253, %p254
      %p256 = scmp.ne.s32.totalorder %s245, %s248
      %p257 = scmp.eq.s32.totalorder %s24, 5
      %p258 = por %p256, %p257
      %p259 = scmp.ne.s32.totalorder %s248, %s249
      %p260 = scmp.eq.s32.totalorder %s24, 0
      %p261 = por %p259, %p260
      %p262 = scmp.ne.s32.totalorder %s248, %s249
      %p263 = scmp.eq.s32.totalorder %s25, 5
      %p264 = por %p262, %p263
      %p266 = scmp.ne.s32.totalorder %s249, %s265
      %p267 = scmp.eq.s32.totalorder %s25, 0
      %p268 = por %p266, %p267
      %s269 = ssub.s32 %s19, %s26
      %p270 = scmp.eq.s32.totalorder %s269, 0
      %s272 = sadd.s32 %s271, 1
      %s273 = scalar_select %p270, %s271, %s272
      %p276 = pneg %p270
      %p277 = scmp.eq.s32.totalorder %s19, 5
      %p278 = por %p276, %p277
      %p279 = scmp.ne.s32.totalorder %s271, %s274
      %p280 = scmp.eq.s32.totalorder %s19, 0
      %p281 = por %p279, %p280
      %p282 = scmp.ne.s32.totalorder %s271, %s274
      %p283 = scmp.eq.s32.totalorder %s24, 5
      %p284 = por %p282, %p283
      %p285 = scmp.ne.s32.totalorder %s274, %s275
      %p286 = scmp.eq.s32.totalorder %s24, 0
      %p287 = por %p285, %p286
      %p288 = scmp.ne.s32.totalorder %s274, %s275
      %p289 = scmp.eq.s32.totalorder %s25, 5
      %p290 = por %p288, %p289
      %p292 = scmp.ne.s32.totalorder %s275, %s291
      %p293 = scmp.eq.s32.totalorder %s25, 0
      %p294 = por %p292, %p293
      %s295 = ssub.s32 %s19, %s26
      %p296 = scmp.eq.s32.totalorder %s295, 0
      %s298 = sadd.s32 %s297, 1
      %s299 = scalar_select %p296, %s297, %s298
      %p302 = pneg %p296
      %p303 = scmp.eq.s32.totalorder %s19, 5
      %p304 = por %p302, %p303
      %p305 = scmp.ne.s32.totalorder %s297, %s300
      %p306 = scmp.eq.s32.totalorder %s19, 0
      %p307 = por %p305, %p306
      %p308 = scmp.ne.s32.totalorder %s297, %s300
      %p309 = scmp.eq.s32.totalorder %s24, 5
      %p310 = por %p308, %p309
      %p311 = scmp.ne.s32.totalorder %s300, %s301
      %p312 = scmp.eq.s32.totalorder %s24, 0
      %p313 = por %p311, %p312
      %p314 = scmp.ne.s32.totalorder %s300, %s301
      %p315 = scmp.eq.s32.totalorder %s25, 5
      %p316 = por %p314, %p315
      %p318 = scmp.ne.s32.totalorder %s301, %s317
      %p319 = scmp.eq.s32.totalorder %s25, 0
      %p320 = por %p318, %p319
      %p321 = scmp.le.s32.totalorder 1, %s19
      %p322 = scmp.lt.s32.totalorder %s19, 7
      %p323 = pnand %p321, %p322
      %p324 = pneg %p323
      // Predicated region
      $region9: #{tpu_custom_call.1} parent=5 // pred_check
        _
      $region10: #{tpu_custom_call.1} parent=5 // pred_check_branch
        %326 = sbr.rel (%p323) target = $region12
      $region11: #{tpu_custom_call.1} parent=5 // pred_region
        %s327 = ssub.s32 %s19, 1
      $region12: #{tpu_custom_call.1} parent=5 // pred_fallthru
        _
      %p328 = scmp.lt.s32.totalorder %s19, 6
      // Predicated region
      $region13: #{tpu_custom_call.1} parent=5 // pred_check
        %p329 = pneg %p328
      $region14: #{tpu_custom_call.1} parent=5 // pred_check_branch
        %331 = sbr.rel (%p329) target = $region16
      $region15: #{tpu_custom_call.1} parent=5 // pred_region
        // Predicated region
        $region17: #{tpu_custom_call.1} parent=15 // pred_check
          %p332 = pneg %p39
        $region18: #{tpu_custom_call.1} parent=15 // pred_check_branch
          %334 = sbr.rel (%p332) target = $region20
        $region19: #{tpu_custom_call.1} parent=15 // pred_region
          %s335 = sand.u32 %s29, 1
          %s336 = sand.u32 %s29, 1
          %s337 = smul.addr %s336, 16
          %s338 = scalar_lea.vmem [#allocation2], %s337
          %s339 = smul.addr %s19, 2
          %s340 = smul.addr %s339, 4
          %s341 = scalar_lea.vmem %s0, %s340
          // Predicated region
          $region21: #{tpu_custom_call.1} parent=19 // pred_check
            _
          $region22: #{tpu_custom_call.1} parent=19 // pred_check_branch
            %343 = sbr.rel (0) target = $region24
          $region23: #{tpu_custom_call.1} parent=19 // pred_region
            // Predicated region
            $region25: #{tpu_custom_call.1} parent=23 // pred_check
              _
            $region26: #{tpu_custom_call.1} parent=23 // pred_check_branch
              %345 = sbr.rel target = $region28
            $region27: #{tpu_custom_call.1} parent=23 // pred_region
              // Predicated region
              $region40: #{tpu_custom_call.1} parent=27 // pred_check
                _
              $region41: #{tpu_custom_call.1} parent=27 // pred_check_branch
                %366 = sbr.rel (0) target = $region43
              $region42: #{tpu_custom_call.1} parent=27 // pred_region
                loop: start=0, step=1, limit=1
                $region44: #{tpu_custom_call.1} parent=42 // loop_pre_header
                  _
                $region45: #{tpu_custom_call.1} parent=42 // loop_header
                  %s368 = sphi 0, %s372
                  %p369 = scmp.ge.s32.totalorder %s368, 1
                  %s373 = sphi %s341, %s341
                  %s374 = sphi %s338, %s338
                $region46: #{tpu_custom_call.1} parent=42 // loop_header_branch
                  %371 = sbr.rel (%p369) target = $region50
                $region47: #{tpu_custom_call.1} parent=42 // loop_body
                  _
                $region48: #{tpu_custom_call.1} parent=42 // loop_footer
                  %s372 = sadd.s32 1, %s368
                $region49: #{tpu_custom_call.1} parent=42 // loop_footer_branch
                  %367 = sbr.rel target = $region45
                $region50: #{tpu_custom_call.1} parent=42 // loop_exit
                  _
                loop: start=0, step=1, limit=1
                $region51: #{tpu_custom_call.1} parent=42 // loop_pre_header
                  _
                $region52: #{tpu_custom_call.1} parent=42 // loop_header
                  %s377 = sphi 0, %s381
                  %p378 = scmp.ge.s32.totalorder %s377, 1
                  %s382 = sphi %s341, %s341
                  %s383 = sphi %s338, %s338
                $region53: #{tpu_custom_call.1} parent=42 // loop_header_branch
                  %380 = sbr.rel (%p378) target = $region57
                $region54: #{tpu_custom_call.1} parent=42 // loop_body
                  %v384 = vld [vmem:[%s382] sm:$0xf]
                  %385 = vst [vmem:[%s383] sm:$0xf] %v384
                  %v386 = vld [vmem:[%s382 + $0x4] sm:$0xf]
                  %387 = vst [vmem:[%s383 + $0x4] sm:$0xf] %v386
                  %v388 = vld [vmem:[%s382 + $0x40] sm:$0xf]
                  %389 = vst [vmem:[%s383 + $0x8] sm:$0xf] %v388
                  %v390 = vld [vmem:[%s382 + $0x44] sm:$0xf]
                  %391 = vst [vmem:[%s383 + $0xc] sm:$0xf] %v390
                $region55: #{tpu_custom_call.1} parent=42 // loop_footer
                  %s381 = sadd.s32 1, %s377
                $region56: #{tpu_custom_call.1} parent=42 // loop_footer_branch
                  %376 = sbr.rel target = $region52
                $region57: #{tpu_custom_call.1} parent=42 // loop_exit
                  _
              $region43: #{tpu_custom_call.1} parent=27 // pred_fallthru
                _
            $region28: #{tpu_custom_call.1} parent=23 // pred_fallthru
              _
            // Predicated region
            $region29: #{tpu_custom_call.1} parent=23 // pred_check
              _
            $region30: #{tpu_custom_call.1} parent=23 // pred_check_branch
              %347 = sbr.rel (0) target = $region32
            $region31: #{tpu_custom_call.1} parent=23 // pred_region
              loop: start=0, step=1, limit=1
              $region33: #{tpu_custom_call.1} parent=31 // loop_pre_header
                _
              $region34: #{tpu_custom_call.1} parent=31 // loop_header
                %s350 = sphi 0, %s354
                %p351 = scmp.ge.s32.totalorder %s350, 1
                %s355 = sphi %s341, %s341
                %s356 = sphi %s338, %s338
              $region35: #{tpu_custom_call.1} parent=31 // loop_header_branch
                %353 = sbr.rel (%p351) target = $region39
              $region36: #{tpu_custom_call.1} parent=31 // loop_body
                %v357 = vld [vmem:[%s355] sm:$0xf]
                %358 = vst [vmem:[%s356] sm:$0xf] %v357
                %v359 = vld [vmem:[%s355 + $0x4] sm:$0xf]
                %360 = vst [vmem:[%s356 + $0x4] sm:$0xf] %v359
                %v361 = vld [vmem:[%s355 + $0x40] sm:$0xf]
                %362 = vst [vmem:[%s356 + $0x8] sm:$0xf] %v361
                %v363 = vld [vmem:[%s355 + $0x44] sm:$0xf]
                %364 = vst [vmem:[%s356 + $0xc] sm:$0xf] %v363
              $region37: #{tpu_custom_call.1} parent=31 // loop_footer
                %s354 = sadd.s32 1, %s350
              $region38: #{tpu_custom_call.1} parent=31 // loop_footer_branch
                %349 = sbr.rel target = $region34
              $region39: #{tpu_custom_call.1} parent=31 // loop_exit
                _
            $region32: #{tpu_custom_call.1} parent=23 // pred_fallthru
              _
          $region24: #{tpu_custom_call.1} parent=19 // pred_fallthru
            _
          %392 = vnop
        $region20: #{tpu_custom_call.1} parent=15 // pred_fallthru
          _
        // Predicated region
        $region58: #{tpu_custom_call.1} parent=15 // pred_check
          %p393 = pneg %p67
        $region59: #{tpu_custom_call.1} parent=15 // pred_check_branch
          %395 = sbr.rel (%p393) target = $region61
        $region60: #{tpu_custom_call.1} parent=15 // pred_region
          %s396 = sand.u32 %s57, 1
          %s397 = sand.u32 %s57, 1
          %s398 = smul.addr %s397, 16
          %s399 = scalar_lea.vmem [#allocation3], %s398
          %s400 = sadd.s32 %s19, 1
          %s401 = smul.addr %s400, 2
          %s402 = smul.addr %s401, 4
          %s403 = scalar_lea.vmem %s1, %s402
          // Predicated region
          $region62: #{tpu_custom_call.1} parent=60 // pred_check
            _
          $region63: #{tpu_custom_call.1} parent=60 // pred_check_branch
            %405 = sbr.rel (0) target = $region65
          $region64: #{tpu_custom_call.1} parent=60 // pred_region
            // Predicated region
            $region66: #{tpu_custom_call.1} parent=64 // pred_check
              _
            $region67: #{tpu_custom_call.1} parent=64 // pred_check_branch
              %407 = sbr.rel target = $region69
            $region68: #{tpu_custom_call.1} parent=64 // pred_region
              // Predicated region
              $region81: #{tpu_custom_call.1} parent=68 // pred_check
                _
              $region82: #{tpu_custom_call.1} parent=68 // pred_check_branch
                %428 = sbr.rel (0) target = $region84
              $region83: #{tpu_custom_call.1} parent=68 // pred_region
                loop: start=0, step=1, limit=1
                $region85: #{tpu_custom_call.1} parent=83 // loop_pre_header
                  _
                $region86: #{tpu_custom_call.1} parent=83 // loop_header
                  %s430 = sphi 0, %s434
                  %p431 = scmp.ge.s32.totalorder %s430, 1
                  %s435 = sphi %s403, %s403
                  %s436 = sphi %s399, %s399
                $region87: #{tpu_custom_call.1} parent=83 // loop_header_branch
                  %433 = sbr.rel (%p431) target = $region91
                $region88: #{tpu_custom_call.1} parent=83 // loop_body
                  _
                $region89: #{tpu_custom_call.1} parent=83 // loop_footer
                  %s434 = sadd.s32 1, %s430
                $region90: #{tpu_custom_call.1} parent=83 // loop_footer_branch
                  %429 = sbr.rel target = $region86
                $region91: #{tpu_custom_call.1} parent=83 // loop_exit
                  _
                loop: start=0, step=1, limit=1
                $region92: #{tpu_custom_call.1} parent=83 // loop_pre_header
                  _
                $region93: #{tpu_custom_call.1} parent=83 // loop_header
                  %s439 = sphi 0, %s443
                  %p440 = scmp.ge.s32.totalorder %s439, 1
                  %s444 = sphi %s403, %s403
                  %s445 = sphi %s399, %s399
                $region94: #{tpu_custom_call.1} parent=83 // loop_header_branch
                  %442 = sbr.rel (%p440) target = $region98
                $region95: #{tpu_custom_call.1} parent=83 // loop_body
                  %v446 = vld [vmem:[%s444] sm:$0xf]
                  %447 = vst [vmem:[%s445] sm:$0xf] %v446
                  %v448 = vld [vmem:[%s444 + $0x4] sm:$0xf]
                  %449 = vst [vmem:[%s445 + $0x4] sm:$0xf] %v448
                  %v450 = vld [vmem:[%s444 + $0x40] sm:$0xf]
                  %451 = vst [vmem:[%s445 + $0x8] sm:$0xf] %v450
                  %v452 = vld [vmem:[%s444 + $0x44] sm:$0xf]
                  %453 = vst [vmem:[%s445 + $0xc] sm:$0xf] %v452
                $region96: #{tpu_custom_call.1} parent=83 // loop_footer
                  %s443 = sadd.s32 1, %s439
                $region97: #{tpu_custom_call.1} parent=83 // loop_footer_branch
                  %438 = sbr.rel target = $region93
                $region98: #{tpu_custom_call.1} parent=83 // loop_exit
                  _
              $region84: #{tpu_custom_call.1} parent=68 // pred_fallthru
                _
            $region69: #{tpu_custom_call.1} parent=64 // pred_fallthru
              _
            // Predicated region
            $region70: #{tpu_custom_call.1} parent=64 // pred_check
              _
            $region71: #{tpu_custom_call.1} parent=64 // pred_check_branch
              %409 = sbr.rel (0) target = $region73
            $region72: #{tpu_custom_call.1} parent=64 // pred_region
              loop: start=0, step=1, limit=1
              $region74: #{tpu_custom_call.1} parent=72 // loop_pre_header
                _
              $region75: #{tpu_custom_call.1} parent=72 // loop_header
                %s412 = sphi 0, %s416
                %p413 = scmp.ge.s32.totalorder %s412, 1
                %s417 = sphi %s403, %s403
                %s418 = sphi %s399, %s399
              $region76: #{tpu_custom_call.1} parent=72 // loop_header_branch
                %415 = sbr.rel (%p413) target = $region80
              $region77: #{tpu_custom_call.1} parent=72 // loop_body
                %v419 = vld [vmem:[%s417] sm:$0xf]
                %420 = vst [vmem:[%s418] sm:$0xf] %v419
                %v421 = vld [vmem:[%s417 + $0x4] sm:$0xf]
                %422 = vst [vmem:[%s418 + $0x4] sm:$0xf] %v421
                %v423 = vld [vmem:[%s417 + $0x40] sm:$0xf]
                %424 = vst [vmem:[%s418 + $0x8] sm:$0xf] %v423
                %v425 = vld [vmem:[%s417 + $0x44] sm:$0xf]
                %426 = vst [vmem:[%s418 + $0xc] sm:$0xf] %v425
              $region78: #{tpu_custom_call.1} parent=72 // loop_footer
                %s416 = sadd.s32 1, %s412
              $region79: #{tpu_custom_call.1} parent=72 // loop_footer_branch
                %411 = sbr.rel target = $region75
              $region80: #{tpu_custom_call.1} parent=72 // loop_exit
                _
            $region73: #{tpu_custom_call.1} parent=64 // pred_fallthru
              _
          $region65: #{tpu_custom_call.1} parent=60 // pred_fallthru
            _
          %454 = vnop
        $region61: #{tpu_custom_call.1} parent=15 // pred_fallthru
          _
        // Predicated region
        $region99: #{tpu_custom_call.1} parent=15 // pred_check
          %p455 = pneg %p95
        $region100: #{tpu_custom_call.1} parent=15 // pred_check_branch
          %457 = sbr.rel (%p455) target = $region102
        $region101: #{tpu_custom_call.1} parent=15 // pred_region
          %s458 = sand.u32 %s85, 1
          %s459 = sand.u32 %s85, 1
          %s460 = smul.addr %s459, 16
          %s461 = scalar_lea.vmem [#allocation4], %s460
          %s462 = sadd.s32 %s19, 2
          %s463 = smul.addr %s462, 2
          %s464 = smul.addr %s463, 4
          %s465 = scalar_lea.vmem %s2, %s464
          // Predicated region
          $region103: #{tpu_custom_call.1} parent=101 // pred_check
            _
          $region104: #{tpu_custom_call.1} parent=101 // pred_check_branch
            %467 = sbr.rel (0) target = $region106
          $region105: #{tpu_custom_call.1} parent=101 // pred_region
            // Predicated region
            $region107: #{tpu_custom_call.1} parent=105 // pred_check
              _
            $region108: #{tpu_custom_call.1} parent=105 // pred_check_branch
              %469 = sbr.rel target = $region110
            $region109: #{tpu_custom_call.1} parent=105 // pred_region
              // Predicated region
              $region122: #{tpu_custom_call.1} parent=109 // pred_check
                _
              $region123: #{tpu_custom_call.1} parent=109 // pred_check_branch
                %490 = sbr.rel (0) target = $region125
              $region124: #{tpu_custom_call.1} parent=109 // pred_region
                loop: start=0, step=1, limit=1
                $region126: #{tpu_custom_call.1} parent=124 // loop_pre_header
                  _
                $region127: #{tpu_custom_call.1} parent=124 // loop_header
                  %s492 = sphi 0, %s496
                  %p493 = scmp.ge.s32.totalorder %s492, 1
                  %s497 = sphi %s465, %s465
                  %s498 = sphi %s461, %s461
                $region128: #{tpu_custom_call.1} parent=124 // loop_header_branch
                  %495 = sbr.rel (%p493) target = $region132
                $region129: #{tpu_custom_call.1} parent=124 // loop_body
                  _
                $region130: #{tpu_custom_call.1} parent=124 // loop_footer
                  %s496 = sadd.s32 1, %s492
                $region131: #{tpu_custom_call.1} parent=124 // loop_footer_branch
                  %491 = sbr.rel target = $region127
                $region132: #{tpu_custom_call.1} parent=124 // loop_exit
                  _
                loop: start=0, step=1, limit=1
                $region133: #{tpu_custom_call.1} parent=124 // loop_pre_header
                  _
                $region134: #{tpu_custom_call.1} parent=124 // loop_header
                  %s501 = sphi 0, %s505
                  %p502 = scmp.ge.s32.totalorder %s501, 1
                  %s506 = sphi %s465, %s465
                  %s507 = sphi %s461, %s461
                $region135: #{tpu_custom_call.1} parent=124 // loop_header_branch
                  %504 = sbr.rel (%p502) target = $region139
                $region136: #{tpu_custom_call.1} parent=124 // loop_body
                  %v508 = vld [vmem:[%s506] sm:$0xf]
                  %509 = vst [vmem:[%s507] sm:$0xf] %v508
                  %v510 = vld [vmem:[%s506 + $0x4] sm:$0xf]
                  %511 = vst [vmem:[%s507 + $0x4] sm:$0xf] %v510
                  %v512 = vld [vmem:[%s506 + $0x40] sm:$0xf]
                  %513 = vst [vmem:[%s507 + $0x8] sm:$0xf] %v512
                  %v514 = vld [vmem:[%s506 + $0x44] sm:$0xf]
                  %515 = vst [vmem:[%s507 + $0xc] sm:$0xf] %v514
                $region137: #{tpu_custom_call.1} parent=124 // loop_footer
                  %s505 = sadd.s32 1, %s501
                $region138: #{tpu_custom_call.1} parent=124 // loop_footer_branch
                  %500 = sbr.rel target = $region134
                $region139: #{tpu_custom_call.1} parent=124 // loop_exit
                  _
              $region125: #{tpu_custom_call.1} parent=109 // pred_fallthru
                _
            $region110: #{tpu_custom_call.1} parent=105 // pred_fallthru
              _
            // Predicated region
            $region111: #{tpu_custom_call.1} parent=105 // pred_check
              _
            $region112: #{tpu_custom_call.1} parent=105 // pred_check_branch
              %471 = sbr.rel (0) target = $region114
            $region113: #{tpu_custom_call.1} parent=105 // pred_region
              loop: start=0, step=1, limit=1
              $region115: #{tpu_custom_call.1} parent=113 // loop_pre_header
                _
              $region116: #{tpu_custom_call.1} parent=113 // loop_header
                %s474 = sphi 0, %s478
                %p475 = scmp.ge.s32.totalorder %s474, 1
                %s479 = sphi %s465, %s465
                %s480 = sphi %s461, %s461
              $region117: #{tpu_custom_call.1} parent=113 // loop_header_branch
                %477 = sbr.rel (%p475) target = $region121
              $region118: #{tpu_custom_call.1} parent=113 // loop_body
                %v481 = vld [vmem:[%s479] sm:$0xf]
                %482 = vst [vmem:[%s480] sm:$0xf] %v481
                %v483 = vld [vmem:[%s479 + $0x4] sm:$0xf]
                %484 = vst [vmem:[%s480 + $0x4] sm:$0xf] %v483
                %v485 = vld [vmem:[%s479 + $0x40] sm:$0xf]
                %486 = vst [vmem:[%s480 + $0x8] sm:$0xf] %v485
                %v487 = vld [vmem:[%s479 + $0x44] sm:$0xf]
                %488 = vst [vmem:[%s480 + $0xc] sm:$0xf] %v487
              $region119: #{tpu_custom_call.1} parent=113 // loop_footer
                %s478 = sadd.s32 1, %s474
              $region120: #{tpu_custom_call.1} parent=113 // loop_footer_branch
                %473 = sbr.rel target = $region116
              $region121: #{tpu_custom_call.1} parent=113 // loop_exit
                _
            $region114: #{tpu_custom_call.1} parent=105 // pred_fallthru
              _
          $region106: #{tpu_custom_call.1} parent=101 // pred_fallthru
            _
          %516 = vnop
        $region102: #{tpu_custom_call.1} parent=15 // pred_fallthru
          _
        // Predicated region
        $region140: #{tpu_custom_call.1} parent=15 // pred_check
          %p517 = pneg %p121
        $region141: #{tpu_custom_call.1} parent=15 // pred_check_branch
          %519 = sbr.rel (%p517) target = $region143
        $region142: #{tpu_custom_call.1} parent=15 // pred_region
          %s520 = sand.u32 %s111, 1
          %s521 = sand.u32 %s111, 1
          %s522 = smul.addr %s521, 16
          %s523 = scalar_lea.vmem [#allocation5], %s522
          %s524 = smul.addr %s19, 2
          %s525 = smul.addr %s524, 4
          %s526 = scalar_lea.vmem %s3, %s525
          // Predicated region
          $region144: #{tpu_custom_call.1} parent=142 // pred_check
            _
          $region145: #{tpu_custom_call.1} parent=142 // pred_check_branch
            %528 = sbr.rel (0) target = $region147
          $region146: #{tpu_custom_call.1} parent=142 // pred_region
            // Predicated region
            $region148: #{tpu_custom_call.1} parent=146 // pred_check
              _
            $region149: #{tpu_custom_call.1} parent=146 // pred_check_branch
              %530 = sbr.rel target = $region151
            $region150: #{tpu_custom_call.1} parent=146 // pred_region
              // Predicated region
              $region163: #{tpu_custom_call.1} parent=150 // pred_check
                _
              $region164: #{tpu_custom_call.1} parent=150 // pred_check_branch
                %551 = sbr.rel (0) target = $region166
              $region165: #{tpu_custom_call.1} parent=150 // pred_region
                loop: start=0, step=1, limit=1
                $region167: #{tpu_custom_call.1} parent=165 // loop_pre_header
                  _
                $region168: #{tpu_custom_call.1} parent=165 // loop_header
                  %s553 = sphi 0, %s557
                  %p554 = scmp.ge.s32.totalorder %s553, 1
                  %s558 = sphi %s526, %s526
                  %s559 = sphi %s523, %s523
                $region169: #{tpu_custom_call.1} parent=165 // loop_header_branch
                  %556 = sbr.rel (%p554) target = $region173
                $region170: #{tpu_custom_call.1} parent=165 // loop_body
                  _
                $region171: #{tpu_custom_call.1} parent=165 // loop_footer
                  %s557 = sadd.s32 1, %s553
                $region172: #{tpu_custom_call.1} parent=165 // loop_footer_branch
                  %552 = sbr.rel target = $region168
                $region173: #{tpu_custom_call.1} parent=165 // loop_exit
                  _
                loop: start=0, step=1, limit=1
                $region174: #{tpu_custom_call.1} parent=165 // loop_pre_header
                  _
                $region175: #{tpu_custom_call.1} parent=165 // loop_header
                  %s562 = sphi 0, %s566
                  %p563 = scmp.ge.s32.totalorder %s562, 1
                  %s567 = sphi %s526, %s526
                  %s568 = sphi %s523, %s523
                $region176: #{tpu_custom_call.1} parent=165 // loop_header_branch
                  %565 = sbr.rel (%p563) target = $region180
                $region177: #{tpu_custom_call.1} parent=165 // loop_body
                  %v569 = vld [vmem:[%s567] sm:$0xf]
                  %570 = vst [vmem:[%s568] sm:$0xf] %v569
                  %v571 = vld [vmem:[%s567 + $0x4] sm:$0xf]
                  %572 = vst [vmem:[%s568 + $0x4] sm:$0xf] %v571
                  %v573 = vld [vmem:[%s567 + $0x40] sm:$0xf]
                  %574 = vst [vmem:[%s568 + $0x8] sm:$0xf] %v573
                  %v575 = vld [vmem:[%s567 + $0x44] sm:$0xf]
                  %576 = vst [vmem:[%s568 + $0xc] sm:$0xf] %v575
                $region178: #{tpu_custom_call.1} parent=165 // loop_footer
                  %s566 = sadd.s32 1, %s562
                $region179: #{tpu_custom_call.1} parent=165 // loop_footer_branch
                  %561 = sbr.rel target = $region175
                $region180: #{tpu_custom_call.1} parent=165 // loop_exit
                  _
              $region166: #{tpu_custom_call.1} parent=150 // pred_fallthru
                _
            $region151: #{tpu_custom_call.1} parent=146 // pred_fallthru
              _
            // Predicated region
            $region152: #{tpu_custom_call.1} parent=146 // pred_check
              _
            $region153: #{tpu_custom_call.1} parent=146 // pred_check_branch
              %532 = sbr.rel (0) target = $region155
            $region154: #{tpu_custom_call.1} parent=146 // pred_region
              loop: start=0, step=1, limit=1
              $region156: #{tpu_custom_call.1} parent=154 // loop_pre_header
                _
              $region157: #{tpu_custom_call.1} parent=154 // loop_header
                %s535 = sphi 0, %s539
                %p536 = scmp.ge.s32.totalorder %s535, 1
                %s540 = sphi %s526, %s526
                %s541 = sphi %s523, %s523
              $region158: #{tpu_custom_call.1} parent=154 // loop_header_branch
                %538 = sbr.rel (%p536) target = $region162
              $region159: #{tpu_custom_call.1} parent=154 // loop_body
                %v542 = vld [vmem:[%s540] sm:$0xf]
                %543 = vst [vmem:[%s541] sm:$0xf] %v542
                %v544 = vld [vmem:[%s540 + $0x4] sm:$0xf]
                %545 = vst [vmem:[%s541 + $0x4] sm:$0xf] %v544
                %v546 = vld [vmem:[%s540 + $0x40] sm:$0xf]
                %547 = vst [vmem:[%s541 + $0x8] sm:$0xf] %v546
                %v548 = vld [vmem:[%s540 + $0x44] sm:$0xf]
                %549 = vst [vmem:[%s541 + $0xc] sm:$0xf] %v548
              $region160: #{tpu_custom_call.1} parent=154 // loop_footer
                %s539 = sadd.s32 1, %s535
              $region161: #{tpu_custom_call.1} parent=154 // loop_footer_branch
                %534 = sbr.rel target = $region157
              $region162: #{tpu_custom_call.1} parent=154 // loop_exit
                _
            $region155: #{tpu_custom_call.1} parent=146 // pred_fallthru
              _
          $region147: #{tpu_custom_call.1} parent=142 // pred_fallthru
            _
          %577 = vnop
        $region143: #{tpu_custom_call.1} parent=15 // pred_fallthru
          _
        // Predicated region
        $region181: #{tpu_custom_call.1} parent=15 // pred_check
          %p578 = pneg %p149
        $region182: #{tpu_custom_call.1} parent=15 // pred_check_branch
          %580 = sbr.rel (%p578) target = $region184
        $region183: #{tpu_custom_call.1} parent=15 // pred_region
          %s581 = sand.u32 %s139, 1
          %s582 = sand.u32 %s139, 1
          %s583 = smul.addr %s582, 16
          %s584 = scalar_lea.vmem [#allocation6], %s583
          %s585 = sadd.s32 %s19, 1
          %s586 = smul.addr %s585, 2
          %s587 = smul.addr %s586, 4
          %s588 = scalar_lea.vmem %s4, %s587
          // Predicated region
          $region185: #{tpu_custom_call.1} parent=183 // pred_check
            _
          $region186: #{tpu_custom_call.1} parent=183 // pred_check_branch
            %590 = sbr.rel (0) target = $region188
          $region187: #{tpu_custom_call.1} parent=183 // pred_region
            // Predicated region
            $region189: #{tpu_custom_call.1} parent=187 // pred_check
              _
            $region190: #{tpu_custom_call.1} parent=187 // pred_check_branch
              %592 = sbr.rel target = $region192
            $region191: #{tpu_custom_call.1} parent=187 // pred_region
              // Predicated region
              $region204: #{tpu_custom_call.1} parent=191 // pred_check
                _
              $region205: #{tpu_custom_call.1} parent=191 // pred_check_branch
                %613 = sbr.rel (0) target = $region207
              $region206: #{tpu_custom_call.1} parent=191 // pred_region
                loop: start=0, step=1, limit=1
                $region208: #{tpu_custom_call.1} parent=206 // loop_pre_header
                  _
                $region209: #{tpu_custom_call.1} parent=206 // loop_header
                  %s615 = sphi 0, %s619
                  %p616 = scmp.ge.s32.totalorder %s615, 1
                  %s620 = sphi %s588, %s588
                  %s621 = sphi %s584, %s584
                $region210: #{tpu_custom_call.1} parent=206 // loop_header_branch
                  %618 = sbr.rel (%p616) target = $region214
                $region211: #{tpu_custom_call.1} parent=206 // loop_body
                  _
                $region212: #{tpu_custom_call.1} parent=206 // loop_footer
                  %s619 = sadd.s32 1, %s615
                $region213: #{tpu_custom_call.1} parent=206 // loop_footer_branch
                  %614 = sbr.rel target = $region209
                $region214: #{tpu_custom_call.1} parent=206 // loop_exit
                  _
                loop: start=0, step=1, limit=1
                $region215: #{tpu_custom_call.1} parent=206 // loop_pre_header
                  _
                $region216: #{tpu_custom_call.1} parent=206 // loop_header
                  %s624 = sphi 0, %s628
                  %p625 = scmp.ge.s32.totalorder %s624, 1
                  %s629 = sphi %s588, %s588
                  %s630 = sphi %s584, %s584
                $region217: #{tpu_custom_call.1} parent=206 // loop_header_branch
                  %627 = sbr.rel (%p625) target = $region221
                $region218: #{tpu_custom_call.1} parent=206 // loop_body
                  %v631 = vld [vmem:[%s629] sm:$0xf]
                  %632 = vst [vmem:[%s630] sm:$0xf] %v631
                  %v633 = vld [vmem:[%s629 + $0x4] sm:$0xf]
                  %634 = vst [vmem:[%s630 + $0x4] sm:$0xf] %v633
                  %v635 = vld [vmem:[%s629 + $0x40] sm:$0xf]
                  %636 = vst [vmem:[%s630 + $0x8] sm:$0xf] %v635
                  %v637 = vld [vmem:[%s629 + $0x44] sm:$0xf]
                  %638 = vst [vmem:[%s630 + $0xc] sm:$0xf] %v637
                $region219: #{tpu_custom_call.1} parent=206 // loop_footer
                  %s628 = sadd.s32 1, %s624
                $region220: #{tpu_custom_call.1} parent=206 // loop_footer_branch
                  %623 = sbr.rel target = $region216
                $region221: #{tpu_custom_call.1} parent=206 // loop_exit
                  _
              $region207: #{tpu_custom_call.1} parent=191 // pred_fallthru
                _
            $region192: #{tpu_custom_call.1} parent=187 // pred_fallthru
              _
            // Predicated region
            $region193: #{tpu_custom_call.1} parent=187 // pred_check
              _
            $region194: #{tpu_custom_call.1} parent=187 // pred_check_branch
              %594 = sbr.rel (0) target = $region196
            $region195: #{tpu_custom_call.1} parent=187 // pred_region
              loop: start=0, step=1, limit=1
              $region197: #{tpu_custom_call.1} parent=195 // loop_pre_header
                _
              $region198: #{tpu_custom_call.1} parent=195 // loop_header
                %s597 = sphi 0, %s601
                %p598 = scmp.ge.s32.totalorder %s597, 1
                %s602 = sphi %s588, %s588
                %s603 = sphi %s584, %s584
              $region199: #{tpu_custom_call.1} parent=195 // loop_header_branch
                %600 = sbr.rel (%p598) target = $region203
              $region200: #{tpu_custom_call.1} parent=195 // loop_body
                %v604 = vld [vmem:[%s602] sm:$0xf]
                %605 = vst [vmem:[%s603] sm:$0xf] %v604
                %v606 = vld [vmem:[%s602 + $0x4] sm:$0xf]
                %607 = vst [vmem:[%s603 + $0x4] sm:$0xf] %v606
                %v608 = vld [vmem:[%s602 + $0x40] sm:$0xf]
                %609 = vst [vmem:[%s603 + $0x8] sm:$0xf] %v608
                %v610 = vld [vmem:[%s602 + $0x44] sm:$0xf]
                %611 = vst [vmem:[%s603 + $0xc] sm:$0xf] %v610
              $region201: #{tpu_custom_call.1} parent=195 // loop_footer
                %s601 = sadd.s32 1, %s597
              $region202: #{tpu_custom_call.1} parent=195 // loop_footer_branch
                %596 = sbr.rel target = $region198
              $region203: #{tpu_custom_call.1} parent=195 // loop_exit
                _
            $region196: #{tpu_custom_call.1} parent=187 // pred_fallthru
              _
          $region188: #{tpu_custom_call.1} parent=183 // pred_fallthru
            _
          %639 = vnop
        $region184: #{tpu_custom_call.1} parent=15 // pred_fallthru
          _
        // Predicated region
        $region222: #{tpu_custom_call.1} parent=15 // pred_check
          %p640 = pneg %p177
        $region223: #{tpu_custom_call.1} parent=15 // pred_check_branch
          %642 = sbr.rel (%p640) target = $region225
        $region224: #{tpu_custom_call.1} parent=15 // pred_region
          %s643 = sand.u32 %s167, 1
          %s644 = sand.u32 %s167, 1
          %s645 = smul.addr %s644, 16
          %s646 = scalar_lea.vmem [#allocation7], %s645
          %s647 = sadd.s32 %s19, 2
          %s648 = smul.addr %s647, 2
          %s649 = smul.addr %s648, 4
          %s650 = scalar_lea.vmem %s5, %s649
          // Predicated region
          $region226: #{tpu_custom_call.1} parent=224 // pred_check
            _
          $region227: #{tpu_custom_call.1} parent=224 // pred_check_branch
            %652 = sbr.rel (0) target = $region229
          $region228: #{tpu_custom_call.1} parent=224 // pred_region
            // Predicated region
            $region230: #{tpu_custom_call.1} parent=228 // pred_check
              _
            $region231: #{tpu_custom_call.1} parent=228 // pred_check_branch
              %654 = sbr.rel target = $region233
            $region232: #{tpu_custom_call.1} parent=228 // pred_region
              // Predicated region
              $region245: #{tpu_custom_call.1} parent=232 // pred_check
                _
              $region246: #{tpu_custom_call.1} parent=232 // pred_check_branch
                %675 = sbr.rel (0) target = $region248
              $region247: #{tpu_custom_call.1} parent=232 // pred_region
                loop: start=0, step=1, limit=1
                $region249: #{tpu_custom_call.1} parent=247 // loop_pre_header
                  _
                $region250: #{tpu_custom_call.1} parent=247 // loop_header
                  %s677 = sphi 0, %s681
                  %p678 = scmp.ge.s32.totalorder %s677, 1
                  %s682 = sphi %s650, %s650
                  %s683 = sphi %s646, %s646
                $region251: #{tpu_custom_call.1} parent=247 // loop_header_branch
                  %680 = sbr.rel (%p678) target = $region255
                $region252: #{tpu_custom_call.1} parent=247 // loop_body
                  _
                $region253: #{tpu_custom_call.1} parent=247 // loop_footer
                  %s681 = sadd.s32 1, %s677
                $region254: #{tpu_custom_call.1} parent=247 // loop_footer_branch
                  %676 = sbr.rel target = $region250
                $region255: #{tpu_custom_call.1} parent=247 // loop_exit
                  _
                loop: start=0, step=1, limit=1
                $region256: #{tpu_custom_call.1} parent=247 // loop_pre_header
                  _
                $region257: #{tpu_custom_call.1} parent=247 // loop_header
                  %s686 = sphi 0, %s690
                  %p687 = scmp.ge.s32.totalorder %s686, 1
                  %s691 = sphi %s650, %s650
                  %s692 = sphi %s646, %s646
                $region258: #{tpu_custom_call.1} parent=247 // loop_header_branch
                  %689 = sbr.rel (%p687) target = $region262
                $region259: #{tpu_custom_call.1} parent=247 // loop_body
                  %v693 = vld [vmem:[%s691] sm:$0xf]
                  %694 = vst [vmem:[%s692] sm:$0xf] %v693
                  %v695 = vld [vmem:[%s691 + $0x4] sm:$0xf]
                  %696 = vst [vmem:[%s692 + $0x4] sm:$0xf] %v695
                  %v697 = vld [vmem:[%s691 + $0x40] sm:$0xf]
                  %698 = vst [vmem:[%s692 + $0x8] sm:$0xf] %v697
                  %v699 = vld [vmem:[%s691 + $0x44] sm:$0xf]
                  %700 = vst [vmem:[%s692 + $0xc] sm:$0xf] %v699
                $region260: #{tpu_custom_call.1} parent=247 // loop_footer
                  %s690 = sadd.s32 1, %s686
                $region261: #{tpu_custom_call.1} parent=247 // loop_footer_branch
                  %685 = sbr.rel target = $region257
                $region262: #{tpu_custom_call.1} parent=247 // loop_exit
                  _
              $region248: #{tpu_custom_call.1} parent=232 // pred_fallthru
                _
            $region233: #{tpu_custom_call.1} parent=228 // pred_fallthru
              _
            // Predicated region
            $region234: #{tpu_custom_call.1} parent=228 // pred_check
              _
            $region235: #{tpu_custom_call.1} parent=228 // pred_check_branch
              %656 = sbr.rel (0) target = $region237
            $region236: #{tpu_custom_call.1} parent=228 // pred_region
              loop: start=0, step=1, limit=1
              $region238: #{tpu_custom_call.1} parent=236 // loop_pre_header
                _
              $region239: #{tpu_custom_call.1} parent=236 // loop_header
                %s659 = sphi 0, %s663
                %p660 = scmp.ge.s32.totalorder %s659, 1
                %s664 = sphi %s650, %s650
                %s665 = sphi %s646, %s646
              $region240: #{tpu_custom_call.1} parent=236 // loop_header_branch
                %662 = sbr.rel (%p660) target = $region244
              $region241: #{tpu_custom_call.1} parent=236 // loop_body
                %v666 = vld [vmem:[%s664] sm:$0xf]
                %667 = vst [vmem:[%s665] sm:$0xf] %v666
                %v668 = vld [vmem:[%s664 + $0x4] sm:$0xf]
                %669 = vst [vmem:[%s665 + $0x4] sm:$0xf] %v668
                %v670 = vld [vmem:[%s664 + $0x40] sm:$0xf]
                %671 = vst [vmem:[%s665 + $0x8] sm:$0xf] %v670
                %v672 = vld [vmem:[%s664 + $0x44] sm:$0xf]
                %673 = vst [vmem:[%s665 + $0xc] sm:$0xf] %v672
              $region242: #{tpu_custom_call.1} parent=236 // loop_footer
                %s663 = sadd.s32 1, %s659
              $region243: #{tpu_custom_call.1} parent=236 // loop_footer_branch
                %658 = sbr.rel target = $region239
              $region244: #{tpu_custom_call.1} parent=236 // loop_exit
                _
            $region237: #{tpu_custom_call.1} parent=228 // pred_fallthru
              _
          $region229: #{tpu_custom_call.1} parent=224 // pred_fallthru
            _
          %701 = vnop
        $region225: #{tpu_custom_call.1} parent=15 // pred_fallthru
          _
        // Predicated region
        $region263: #{tpu_custom_call.1} parent=15 // pred_check
          %p702 = pneg %p203
        $region264: #{tpu_custom_call.1} parent=15 // pred_check_branch
          %704 = sbr.rel (%p702) target = $region266
        $region265: #{tpu_custom_call.1} parent=15 // pred_region
          %p705 = scmp.lt.s32.totalorder %s19, 5
          %s706 = scalar_select %p705, %s19, 5
          %s707 = smul.addr %s706, 2
          %s708 = scalar_lea.vmem %s6, %s707
        $region266: #{tpu_custom_call.1} parent=15 // pred_fallthru
          _
        // Predicated region
        $region267: #{tpu_custom_call.1} parent=15 // pred_check
          %p709 = pneg %p229
        $region268: #{tpu_custom_call.1} parent=15 // pred_check_branch
          %711 = sbr.rel (%p709) target = $region270
        $region269: #{tpu_custom_call.1} parent=15 // pred_region
          %p712 = scmp.lt.s32.totalorder %s19, 5
          %s713 = scalar_select %p712, %s19, 5
          %s714 = scalar_lea.vmem %s7, %s713
        $region270: #{tpu_custom_call.1} parent=15 // pred_fallthru
          _
        // Predicated region
        $region271: #{tpu_custom_call.1} parent=15 // pred_check
          %p715 = pneg %p255
        $region272: #{tpu_custom_call.1} parent=15 // pred_check_branch
          %717 = sbr.rel (%p715) target = $region274
        $region273: #{tpu_custom_call.1} parent=15 // pred_region
          %p718 = scmp.lt.s32.totalorder %s19, 5
          %s719 = scalar_select %p718, %s19, 5
          %s720 = smul.addr %s719, 4
          %s721 = smul.addr %s720, 4
          %s722 = scalar_lea.vmem %s8, %s721
        $region274: #{tpu_custom_call.1} parent=15 // pred_fallthru
          _
        // Predicated region
        $region275: #{tpu_custom_call.1} parent=15 // pred_check
          %p723 = pneg %p281
        $region276: #{tpu_custom_call.1} parent=15 // pred_check_branch
          %725 = sbr.rel (%p723) target = $region278
        $region277: #{tpu_custom_call.1} parent=15 // pred_region
          %p726 = scmp.lt.s32.totalorder %s19, 5
          %s727 = scalar_select %p726, %s19, 5
          %s728 = scalar_lea.vmem %s9, %s727
        $region278: #{tpu_custom_call.1} parent=15 // pred_fallthru
          _
      $region16: #{tpu_custom_call.1} parent=5 // pred_fallthru
        _
      %p729 = scmp.le.s32.totalorder 1, %s19
      %p730 = scmp.lt.s32.totalorder %s19, 7
      %p731 = pnand %p729, %p730
      %p732 = pneg %p731
      // Predicated region
      $region279: #{tpu_custom_call.1} parent=5 // pred_check
        _
      $region280: #{tpu_custom_call.1} parent=5 // pred_check_branch
        %734 = sbr.rel (%p731) target = $region282
      $region281: #{tpu_custom_call.1} parent=5 // pred_region
        %s735 = ssub.s32 %s19, 1
        %s736 = sand.u32 %s32, 1
        %s737 = sand.u32 %s32, 1
        %s738 = smul.addr %s737, 16
        %s739 = scalar_lea.vmem [#allocation2], %s738
        // Predicated region
        $region283: #{tpu_custom_call.1} parent=281 // pred_check
          %p740 = pneg %p45
        $region284: #{tpu_custom_call.1} parent=281 // pred_check_branch
          %742 = sbr.rel (%p740) target = $region286
        $region285: #{tpu_custom_call.1} parent=281 // pred_region
          _
        $region286: #{tpu_custom_call.1} parent=281 // pred_fallthru
          _
        %s743 = sand.u32 %s60, 1
        %s744 = sand.u32 %s60, 1
        %s745 = smul.addr %s744, 16
        %s746 = scalar_lea.vmem [#allocation3], %s745
        // Predicated region
        $region287: #{tpu_custom_call.1} parent=281 // pred_check
          %p747 = pneg %p73
        $region288: #{tpu_custom_call.1} parent=281 // pred_check_branch
          %749 = sbr.rel (%p747) target = $region290
        $region289: #{tpu_custom_call.1} parent=281 // pred_region
          _
        $region290: #{tpu_custom_call.1} parent=281 // pred_fallthru
          _
        %s750 = sand.u32 %s88, 1
        %s751 = sand.u32 %s88, 1
        %s752 = smul.addr %s751, 16
        %s753 = scalar_lea.vmem [#allocation4], %s752
        // Predicated region
        $region291: #{tpu_custom_call.1} parent=281 // pred_check
          %p754 = pneg %p101
        $region292: #{tpu_custom_call.1} parent=281 // pred_check_branch
          %756 = sbr.rel (%p754) target = $region294
        $region293: #{tpu_custom_call.1} parent=281 // pred_region
          _
        $region294: #{tpu_custom_call.1} parent=281 // pred_fallthru
          _
        %s757 = sand.u32 %s114, 1
        %s758 = sand.u32 %s114, 1
        %s759 = smul.addr %s758, 16
        %s760 = scalar_lea.vmem [#allocation5], %s759
        // Predicated region
        $region295: #{tpu_custom_call.1} parent=281 // pred_check
          %p761 = pneg %p127
        $region296: #{tpu_custom_call.1} parent=281 // pred_check_branch
          %763 = sbr.rel (%p761) target = $region298
        $region297: #{tpu_custom_call.1} parent=281 // pred_region
          _
        $region298: #{tpu_custom_call.1} parent=281 // pred_fallthru
          _
        %s764 = sand.u32 %s142, 1
        %s765 = sand.u32 %s142, 1
        %s766 = smul.addr %s765, 16
        %s767 = scalar_lea.vmem [#allocation6], %s766
        // Predicated region
        $region299: #{tpu_custom_call.1} parent=281 // pred_check
          %p768 = pneg %p155
        $region300: #{tpu_custom_call.1} parent=281 // pred_check_branch
          %770 = sbr.rel (%p768) target = $region302
        $region301: #{tpu_custom_call.1} parent=281 // pred_region
          _
        $region302: #{tpu_custom_call.1} parent=281 // pred_fallthru
          _
        %s771 = sand.u32 %s170, 1
        %s772 = sand.u32 %s170, 1
        %s773 = smul.addr %s772, 16
        %s774 = scalar_lea.vmem [#allocation7], %s773
        // Predicated region
        $region303: #{tpu_custom_call.1} parent=281 // pred_check
          %p775 = pneg %p183
        $region304: #{tpu_custom_call.1} parent=281 // pred_check_branch
          %777 = sbr.rel (%p775) target = $region306
        $region305: #{tpu_custom_call.1} parent=281 // pred_region
          _
        $region306: #{tpu_custom_call.1} parent=281 // pred_fallthru
          _
        %s778 = sand.u32 %s32, 1
        %s779 = sand.u32 %s32, 1
        %s780 = smul.addr %s779, 16
        %s781 = scalar_lea.vmem [#allocation2], %s780
        %p782 = pneg %p45
        %p783 = pneg %p42
        %s784 = sand.u32 %s60, 1
        %s785 = sand.u32 %s60, 1
        %s786 = smul.addr %s785, 16
        %s787 = scalar_lea.vmem [#allocation3], %s786
        %p788 = pneg %p73
        %p789 = pneg %p70
        %s790 = sand.u32 %s88, 1
        %s791 = sand.u32 %s88, 1
        %s792 = smul.addr %s791, 16
        %s793 = scalar_lea.vmem [#allocation4], %s792
        %p794 = pneg %p101
        %p795 = pneg %p98
        %s796 = sand.u32 %s114, 1
        %s797 = sand.u32 %s114, 1
        %s798 = smul.addr %s797, 16
        %s799 = scalar_lea.vmem [#allocation5], %s798
        %p800 = pneg %p127
        %p801 = pneg %p124
        %s802 = sand.u32 %s142, 1
        %s803 = sand.u32 %s142, 1
        %s804 = smul.addr %s803, 16
        %s805 = scalar_lea.vmem [#allocation6], %s804
        %p806 = pneg %p155
        %p807 = pneg %p152
        %s808 = sand.u32 %s170, 1
        %s809 = sand.u32 %s170, 1
        %s810 = smul.addr %s809, 16
        %s811 = scalar_lea.vmem [#allocation7], %s810
        %p812 = pneg %p183
        %p813 = pneg %p180
        %p814 = scmp.lt.s32.totalorder %s24, 5
        %s815 = scalar_select %p814, %s24, 5
        %s816 = smul.addr %s815, 2
        %s817 = scalar_lea.vmem %s6, %s816
        %p818 = pneg %p209
        %p819 = pneg %p206
        %p820 = scmp.lt.s32.totalorder %s24, 5
        %s821 = scalar_select %p820, %s24, 5
        %s822 = scalar_lea.vmem %s7, %s821
        %p823 = pneg %p235
        %p824 = pneg %p232
        %p825 = scmp.lt.s32.totalorder %s24, 5
        %s826 = scalar_select %p825, %s24, 5
        %s827 = smul.addr %s826, 4
        %s828 = smul.addr %s827, 4
        %s829 = scalar_lea.vmem %s8, %s828
        %p830 = pneg %p261
        %p831 = pneg %p258
        %p832 = scmp.lt.s32.totalorder %s24, 5
        %s833 = scalar_select %p832, %s24, 5
        %s834 = scalar_lea.vmem %s9, %s833
        %p835 = pneg %p287
        %p836 = pneg %p284
        %p837 = pneg %p313
        %p838 = pneg %p310
        %s839 = sand.u32 %s300, 1
        %s840 = scalar_lea.sflag [#allocation9], %s839
        %s841 = sand.u32 %s300, 1
        %s842 = smul.addr %s841, 32
        %s843 = scalar_lea.vmem [#allocation8], %s842
        %s844 = sadd.s32 %s24, 1
        %s845 = sadd.s32 %s24, 2
        %s846 = sadd.s32 %s24, 1
        %s847 = sadd.s32 %s24, 2
        %p848 = scmp.lt.s32.totalorder %s24, 5
        %s849 = scalar_select %p848, %s24, 5
        %s850 = smul.addr %s849, 2
        %s851 = scalar_lea.vmem %s6, %s850
        %p852 = scmp.lt.s32.totalorder %s24, 5
        %s853 = scalar_select %p852, %s24, 5
        %s854 = scalar_lea.vmem %s7, %s853
        %p855 = scmp.lt.s32.totalorder %s24, 5
        %s856 = scalar_select %p855, %s24, 5
        %s857 = smul.addr %s856, 4
        %s858 = smul.addr %s857, 4
        %s859 = scalar_lea.vmem %s8, %s858
        %p860 = scmp.lt.s32.totalorder %s24, 5
        %s861 = scalar_select %p860, %s24, 5
        %s862 = scalar_lea.vmem %s9, %s861
        %v864 = vld [vmem:[%s739] sm:$0xf]
        %v865 = vld [vmem:[%s739 + $0x4] sm:$0xf]
        %v866 = vld [vmem:[%s739 + $0x8] sm:$0xf]
        %v867 = vld [vmem:[%s739 + $0xc] sm:$0xf]
        %v868 = vld [vmem:[%s746] sm:$0xf]
        %v869 = vld [vmem:[%s746 + $0x4] sm:$0xf]
        %v870 = vld [vmem:[%s746 + $0x8] sm:$0xf]
        %v871 = vld [vmem:[%s746 + $0xc] sm:$0xf]
        %v872 = vld [vmem:[%s753] sm:$0xf]
        %v873 = vld [vmem:[%s753 + $0x4] sm:$0xf]
        %v874 = vld [vmem:[%s753 + $0x8] sm:$0xf]
        %v875 = vld [vmem:[%s753 + $0xc] sm:$0xf]
        %v876 = vld [vmem:[%s760] sm:$0xf]
        %v877 = vld [vmem:[%s760 + $0x4] sm:$0xf]
        %v878 = vld [vmem:[%s760 + $0x8] sm:$0xf]
        %v879 = vld [vmem:[%s760 + $0xc] sm:$0xf]
        %v880 = vld [vmem:[%s767] sm:$0xf]
        %v881 = vld [vmem:[%s767 + $0x4] sm:$0xf]
        %v882 = vld [vmem:[%s767 + $0x8] sm:$0xf]
        %v883 = vld [vmem:[%s767 + $0xc] sm:$0xf]
        %v884 = vld [vmem:[%s774] sm:$0xf]
        %v885 = vld [vmem:[%s774 + $0x4] sm:$0xf]
        %v886 = vld [vmem:[%s774 + $0x8] sm:$0xf]
        %v887 = vld [vmem:[%s774 + $0xc] sm:$0xf]
        %v888 = vld [vmem:[%s851] sm:$0x3]
        %v889 = vld [vmem:[%s854] sm:$0x1]
        %v890 = vunpack.c.l.bf16 %v876
        %v891 = vunpack.c.l.bf16 %v877
        %v892 = vunpack.c.l.bf16 %v878
        %v893 = vunpack.c.l.bf16 %v879
        %v894 = vunpack.c.l.bf16 %v880
        %v895 = vunpack.c.l.bf16 %v881
        %v896 = vunpack.c.l.bf16 %v882
        %v897 = vunpack.c.l.bf16 %v883
        %v898 = vunpack.c.l.bf16 %v884
        %v899 = vunpack.c.l.bf16 %v885
        %v900 = vunpack.c.l.bf16 %v886
        %v901 = vunpack.c.l.bf16 %v887
        %v904 = vunpack.c.l.b16 %v864
        %v905 = vunpack.c.l.b16 %v865
        %v906 = vpack.c.b16 %v905, %v904
        %v909 = vunpack.c.l.b16 %v876
        %v910 = vunpack.c.l.b16 %v877
        %v911 = vpack.c.b16 %v910, %v909
        %vm913 = vcmask 130048
        %v915 = vsel %vm913, %v906, 0
        %917 = vmatprep.subr.bf16.mxu0 0
        %918 = vmatpush1.bf16.msra.mxu0 %v911
        %919 = vmatprep.subr.bf16.mxu0 0
        %920 = vmatpush1.bf16.msra.mxu0 0
        %921 = vmatprep.subr.bf16.mxu0 0
        %922 = vmatpush1.bf16.msra.mxu0 0
        %923 = vmatprep.subr.bf16.mxu0 0
        %924 = vmatpush1.bf16.msra.mxu0 0
        %925 = vmatprep.subr.bf16.mxu0 0
        %926 = vmatpush1.bf16.msra.mxu0 0
        %927 = vmatprep.subr.bf16.mxu0 0
        %928 = vmatpush1.bf16.msra.mxu0 0
        %929 = vmatprep.subr.bf16.mxu0 0
        %930 = vmatpush1.bf16.msra.mxu0 0
        %931 = vmatprep.subr.bf16.mxu0 0
        %932 = vmatpush1.bf16.msra.mxu0 0
        %933 = vmatprep.subr.bf16.mxu0 0
        %934 = vmatpush1.bf16.msra.mxu0 0
        %935 = vmatprep.subr.bf16.mxu0 0
        %936 = vmatpush1.bf16.msra.mxu0 0
        %937 = vmatprep.subr.bf16.mxu0 0
        %938 = vmatpush1.bf16.msra.mxu0 0
        %939 = vmatprep.subr.bf16.mxu0 0
        %940 = vmatpush1.bf16.msra.mxu0 0
        %941 = vmatprep.subr.bf16.mxu0 0
        %942 = vmatpush1.bf16.msra.mxu0 0
        %943 = vmatprep.subr.bf16.mxu0 0
        %944 = vmatpush1.bf16.msra.mxu0 0
        %945 = vmatprep.subr.bf16.mxu0 0
        %946 = vmatpush1.bf16.msra.mxu0 0
        %947 = vmatprep.subr.bf16.mxu0 0
        %948 = vmatpush1.bf16.msra.mxu0 0
        %949 = vmatprep.mubr.bf16.mxu0 0
        %950 = vmatmul.mubr.bf16.gmra.mrb[0].mxu0 %v915
        %v951 = vpop.f32.mrb[0].mxu0
        %v952 = vadd.f32 %v894, %v951
        %v953 = vpop.f32.mrb[0].mxu0
        %v954 = vpop.f32.mrb[0].mxu0
        %v955 = vadd.f32 %v895, %v954
        %v956 = vpop.f32.mrb[0].mxu0
        %957 = vdwg.mxu0
        %v960 = vunpack.c.l.b16 %v866
        %v961 = vunpack.c.l.b16 %v867
        %v962 = vpack.c.b16 %v961, %v960
        %v965 = vunpack.c.l.b16 %v878
        %v966 = vunpack.c.l.b16 %v879
        %v967 = vpack.c.b16 %v966, %v965
        %v970 = vsel %vm913, %v962, 0
        %972 = vmatprep.subr.bf16.mxu0 0
        %973 = vmatpush1.bf16.msra.mxu0 %v967
        %974 = vmatprep.subr.bf16.mxu0 0
        %975 = vmatpush1.bf16.msra.mxu0 0
        %976 = vmatprep.subr.bf16.mxu0 0
        %977 = vmatpush1.bf16.msra.mxu0 0
        %978 = vmatprep.subr.bf16.mxu0 0
        %979 = vmatpush1.bf16.msra.mxu0 0
        %980 = vmatprep.subr.bf16.mxu0 0
        %981 = vmatpush1.bf16.msra.mxu0 0
        %982 = vmatprep.subr.bf16.mxu0 0
        %983 = vmatpush1.bf16.msra.mxu0 0
        %984 = vmatprep.subr.bf16.mxu0 0
        %985 = vmatpush1.bf16.msra.mxu0 0
        %986 = vmatprep.subr.bf16.mxu0 0
        %987 = vmatpush1.bf16.msra.mxu0 0
        %988 = vmatprep.subr.bf16.mxu0 0
        %989 = vmatpush1.bf16.msra.mxu0 0
        %990 = vmatprep.subr.bf16.mxu0 0
        %991 = vmatpush1.bf16.msra.mxu0 0
        %992 = vmatprep.subr.bf16.mxu0 0
        %993 = vmatpush1.bf16.msra.mxu0 0
        %994 = vmatprep.subr.bf16.mxu0 0
        %995 = vmatpush1.bf16.msra.mxu0 0
        %996 = vmatprep.subr.bf16.mxu0 0
        %997 = vmatpush1.bf16.msra.mxu0 0
        %998 = vmatprep.subr.bf16.mxu0 0
        %999 = vmatpush1.bf16.msra.mxu0 0
        %1000 = vmatprep.subr.bf16.mxu0 0
        %1001 = vmatpush1.bf16.msra.mxu0 0
        %1002 = vmatprep.subr.bf16.mxu0 0
        %1003 = vmatpush1.bf16.msra.mxu0 0
        %1004 = vmatprep.mubr.bf16.mxu0 0
        %1005 = vmatmul.mubr.bf16.gmra.mrb[0].mxu0 %v970
        %v1006 = vpop.f32.mrb[0].mxu0
        %v1007 = vadd.f32 %v896, %v1006
        %v1008 = vpop.f32.mrb[0].mxu0
        %v1009 = vpop.f32.mrb[0].mxu0
        %v1010 = vadd.f32 %v897, %v1009
        %v1011 = vpop.f32.mrb[0].mxu0
        %1012 = vdwg.mxu0
        %v1013 = vpack.c.bf16 %v955, %v952
        %v1014 = vpack.c.bf16 %v1010, %v1007
        %v1016 = vlaneseq
        %v1017 = vshrl.u32 %v1016, 7
        %v1018 = vsub.s32 0, %v1017
        %v1019 = vrot.slane %v889, %v1018
        %vm1021 = vcmask 31744
        %v1023 = vsel %vm1021, %v1013, 0
        %v1026 = vsel %vm1021, %v1014, 0
        %vm1028 = vcmask 1041408
        %v1030 = vsel %vm1028, %v888, 0
        %1032 = vmatprep.subr.bf16.mxu0 0
        %1033 = vmatpush1.bf16.msra.mxu0 %v1030
        %1034 = vmatprep.subr.bf16.mxu0 0
        %1035 = vmatpush1.bf16.msra.mxu0 0
        %1036 = vmatprep.subr.bf16.mxu0 0
        %1037 = vmatpush1.bf16.msra.mxu0 0
        %1038 = vmatprep.subr.bf16.mxu0 0
        %1039 = vmatpush1.bf16.msra.mxu0 0
        %1040 = vmatprep.subr.bf16.mxu0 0
        %1041 = vmatpush1.bf16.msra.mxu0 0
        %1042 = vmatprep.subr.bf16.mxu0 0
        %1043 = vmatpush1.bf16.msra.mxu0 0
        %1044 = vmatprep.subr.bf16.mxu0 0
        %1045 = vmatpush1.bf16.msra.mxu0 0
        %1046 = vmatprep.subr.bf16.mxu0 0
        %1047 = vmatpush1.bf16.msra.mxu0 0
        %1048 = vmatprep.subr.bf16.mxu0 0
        %1049 = vmatpush1.bf16.msra.mxu0 0
        %1050 = vmatprep.subr.bf16.mxu0 0
        %1051 = vmatpush1.bf16.msra.mxu0 0
        %1052 = vmatprep.subr.bf16.mxu0 0
        %1053 = vmatpush1.bf16.msra.mxu0 0
        %1054 = vmatprep.subr.bf16.mxu0 0
        %1055 = vmatpush1.bf16.msra.mxu0 0
        %1056 = vmatprep.subr.bf16.mxu0 0
        %1057 = vmatpush1.bf16.msra.mxu0 0
        %1058 = vmatprep.subr.bf16.mxu0 0
        %1059 = vmatpush1.bf16.msra.mxu0 0
        %1060 = vmatprep.subr.bf16.mxu0 0
        %1061 = vmatpush1.bf16.msra.mxu0 0
        %1062 = vmatprep.subr.bf16.mxu0 0
        %1063 = vmatpush1.bf16.msra.mxu0 0
        %1064 = vmatprep.mubr.bf16.mxu0 0
        %1065 = vmatmul.mubr.bf16.gmra.mrb[0].mxu0 %v1023
        %v1066 = vpop.f32.mrb[0].mxu0
        %v1067 = vadd.f32 %v1019, %v1066
        %v1068 = vpop.f32.mrb[0].mxu0
        %v1069 = vpop.f32.mrb[0].mxu0
        %v1070 = vadd.f32 %v1019, %v1069
        %v1071 = vpop.f32.mrb[0].mxu0
        %1072 = vmatprep.mubr.bf16.mxu0 0
        %1073 = vmatmul.mubr.bf16.gmra.mrb[0].mxu0 %v1026
        %v1074 = vpop.f32.mrb[0].mxu0
        %v1075 = vadd.f32 %v1019, %v1074
        %v1076 = vpop.f32.mrb[0].mxu0
        %v1077 = vpop.f32.mrb[0].mxu0
        %v1078 = vadd.f32 %v1019, %v1077
        %v1079 = vpop.f32.mrb[0].mxu0
        %1080 = vdwg.mxu0
        %v1081 = vxor.u32 %v1067, 2147483648
        %v1082 = vxor.u32 %v1070, 2147483648
        %v1083 = vxor.u32 %v1075, 2147483648
        %v1084 = vxor.u32 %v1078, 2147483648
        %v1085 = vmul.f32 %v1081, 1.442695
        %v1086 = vpow.pop %v1085
        %v1087 = vmul.f32 %v1082, 1.442695
        %v1088 = vpow.pop %v1087
        %v1089 = vmul.f32 %v1083, 1.442695
        %v1090 = vpow.pop %v1089
        %v1091 = vmul.f32 %v1084, 1.442695
        %v1092 = vpow.pop %v1091
        %v1093 = vadd.f32 %v1086, 1.0
        %v1094 = vadd.f32 %v1088, 1.0
        %v1095 = vadd.f32 %v1090, 1.0
        %v1096 = vadd.f32 %v1092, 1.0
        %v1097 = vrcp.pop %v1093
        %v1098 = vmul.f32 1.0, %v1097
        %v1099 = vrcp.pop %v1094
        %v1100 = vmul.f32 1.0, %v1099
        %v1101 = vrcp.pop %v1095
        %v1102 = vmul.f32 1.0, %v1101
        %v1103 = vrcp.pop %v1096
        %v1104 = vmul.f32 1.0, %v1103
        %1109 = vrot.lane.b32.xlu0 %v1098, 96
        %v1110 = vpop.permute.xlu0 %1109
        %1111 = vrot.lane.b32.xlu0 %v1100, 96
        %v1112 = vpop.permute.xlu0 %1111
        %1113 = vrot.lane.b32.xlu0 %v1102, 96
        %v1114 = vpop.permute.xlu0 %1113
        %1115 = vrot.lane.b32.xlu0 %v1104, 96
        %v1116 = vpop.permute.xlu0 %1115
        %v1121 = vmul.f32 %v1067, %v1110
        %v1122 = vmul.f32 %v1070, %v1112
        %v1123 = vmul.f32 %v1075, %v1114
        %v1124 = vmul.f32 %v1078, %v1116
        %v1127 = vunpack.c.l.b16 %v868
        %v1128 = vunpack.c.l.b16 %v869
        %v1129 = vpack.c.b16 %v1128, %v1127
        %v1132 = vunpack.c.l.b16 %v880
        %v1133 = vunpack.c.l.b16 %v881
        %v1134 = vpack.c.b16 %v1133, %v1132
        %v1137 = vsel %vm913, %v1129, 0
        %1139 = vmatprep.subr.bf16.mxu0 0
        %1140 = vmatpush1.bf16.msra.mxu0 %v1134
        %1141 = vmatprep.subr.bf16.mxu0 0
        %1142 = vmatpush1.bf16.msra.mxu0 0
        %1143 = vmatprep.subr.bf16.mxu0 0
        %1144 = vmatpush1.bf16.msra.mxu0 0
        %1145 = vmatprep.subr.bf16.mxu0 0
        %1146 = vmatpush1.bf16.msra.mxu0 0
        %1147 = vmatprep.subr.bf16.mxu0 0
        %1148 = vmatpush1.bf16.msra.mxu0 0
        %1149 = vmatprep.subr.bf16.mxu0 0
        %1150 = vmatpush1.bf16.msra.mxu0 0
        %1151 = vmatprep.subr.bf16.mxu0 0
        %1152 = vmatpush1.bf16.msra.mxu0 0
        %1153 = vmatprep.subr.bf16.mxu0 0
        %1154 = vmatpush1.bf16.msra.mxu0 0
        %1155 = vmatprep.subr.bf16.mxu0 0
        %1156 = vmatpush1.bf16.msra.mxu0 0
        %1157 = vmatprep.subr.bf16.mxu0 0
        %1158 = vmatpush1.bf16.msra.mxu0 0
        %1159 = vmatprep.subr.bf16.mxu0 0
        %1160 = vmatpush1.bf16.msra.mxu0 0
        %1161 = vmatprep.subr.bf16.mxu0 0
        %1162 = vmatpush1.bf16.msra.mxu0 0
        %1163 = vmatprep.subr.bf16.mxu0 0
        %1164 = vmatpush1.bf16.msra.mxu0 0
        %1165 = vmatprep.subr.bf16.mxu0 0
        %1166 = vmatpush1.bf16.msra.mxu0 0
        %1167 = vmatprep.subr.bf16.mxu0 0
        %1168 = vmatpush1.bf16.msra.mxu0 0
        %1169 = vmatprep.subr.bf16.mxu0 0
        %1170 = vmatpush1.bf16.msra.mxu0 0
        %1171 = vmatprep.mubr.bf16.mxu0 0
        %1172 = vmatmul.mubr.bf16.gmra.mrb[0].mxu0 %v1137
        %v1173 = vpop.f32.mrb[0].mxu0
        %v1174 = vadd.f32 %v890, %v1173
        %v1175 = vpop.f32.mrb[0].mxu0
        %v1176 = vpop.f32.mrb[0].mxu0
        %v1177 = vadd.f32 %v891, %v1176
        %v1178 = vpop.f32.mrb[0].mxu0
        %1179 = vdwg.mxu0
        %v1182 = vunpack.c.l.b16 %v870
        %v1183 = vunpack.c.l.b16 %v871
        %v1184 = vpack.c.b16 %v1183, %v1182
        %v1187 = vunpack.c.l.b16 %v882
        %v1188 = vunpack.c.l.b16 %v883
        %v1189 = vpack.c.b16 %v1188, %v1187
        %v1192 = vsel %vm913, %v1184, 0
        %1194 = vmatprep.subr.bf16.mxu0 0
        %1195 = vmatpush1.bf16.msra.mxu0 %v1189
        %1196 = vmatprep.subr.bf16.mxu0 0
        %1197 = vmatpush1.bf16.msra.mxu0 0
        %1198 = vmatprep.subr.bf16.mxu0 0
        %1199 = vmatpush1.bf16.msra.mxu0 0
        %1200 = vmatprep.subr.bf16.mxu0 0
        %1201 = vmatpush1.bf16.msra.mxu0 0
        %1202 = vmatprep.subr.bf16.mxu0 0
        %1203 = vmatpush1.bf16.msra.mxu0 0
        %1204 = vmatprep.subr.bf16.mxu0 0
        %1205 = vmatpush1.bf16.msra.mxu0 0
        %1206 = vmatprep.subr.bf16.mxu0 0
        %1207 = vmatpush1.bf16.msra.mxu0 0
        %1208 = vmatprep.subr.bf16.mxu0 0
        %1209 = vmatpush1.bf16.msra.mxu0 0
        %1210 = vmatprep.subr.bf16.mxu0 0
        %1211 = vmatpush1.bf16.msra.mxu0 0
        %1212 = vmatprep.subr.bf16.mxu0 0
        %1213 = vmatpush1.bf16.msra.mxu0 0
        %1214 = vmatprep.subr.bf16.mxu0 0
        %1215 = vmatpush1.bf16.msra.mxu0 0
        %1216 = vmatprep.subr.bf16.mxu0 0
        %1217 = vmatpush1.bf16.msra.mxu0 0
        %1218 = vmatprep.subr.bf16.mxu0 0
        %1219 = vmatpush1.bf16.msra.mxu0 0
        %1220 = vmatprep.subr.bf16.mxu0 0
        %1221 = vmatpush1.bf16.msra.mxu0 0
        %1222 = vmatprep.subr.bf16.mxu0 0
        %1223 = vmatpush1.bf16.msra.mxu0 0
        %1224 = vmatprep.subr.bf16.mxu0 0
        %1225 = vmatpush1.bf16.msra.mxu0 0
        %1226 = vmatprep.mubr.bf16.mxu0 0
        %1227 = vmatmul.mubr.bf16.gmra.mrb[0].mxu0 %v1192
        %v1228 = vpop.f32.mrb[0].mxu0
        %v1229 = vadd.f32 %v892, %v1228
        %v1230 = vpop.f32.mrb[0].mxu0
        %v1231 = vpop.f32.mrb[0].mxu0
        %v1232 = vadd.f32 %v893, %v1231
        %v1233 = vpop.f32.mrb[0].mxu0
        %1234 = vdwg.mxu0
        %v1235 = vadd.f32 %v1174, %v898
        %v1236 = vadd.f32 %v1177, %v899
        %v1237 = vadd.f32 %v1229, %v900
        %v1238 = vadd.f32 %v1232, %v901
        %v1239 = vpack.c.bf16 %v1236, %v1235
        %v1240 = vpack.c.bf16 %v1238, %v1237
        %v1242 = vsel %vm1021, %v1239, 0
        %v1245 = vsel %vm1021, %v1240, 0
        %1247 = vmatprep.subr.bf16.mxu0 0
        %1248 = vmatpush1.bf16.msra.mxu0 %v1030
        %1249 = vmatprep.subr.bf16.mxu0 0
        %1250 = vmatpush1.bf16.msra.mxu0 0
        %1251 = vmatprep.subr.bf16.mxu0 0
        %1252 = vmatpush1.bf16.msra.mxu0 0
        %1253 = vmatprep.subr.bf16.mxu0 0
        %1254 = vmatpush1.bf16.msra.mxu0 0
        %1255 = vmatprep.subr.bf16.mxu0 0
        %1256 = vmatpush1.bf16.msra.mxu0 0
        %1257 = vmatprep.subr.bf16.mxu0 0
        %1258 = vmatpush1.bf16.msra.mxu0 0
        %1259 = vmatprep.subr.bf16.mxu0 0
        %1260 = vmatpush1.bf16.msra.mxu0 0
        %1261 = vmatprep.subr.bf16.mxu0 0
        %1262 = vmatpush1.bf16.msra.mxu0 0
        %1263 = vmatprep.subr.bf16.mxu0 0
        %1264 = vmatpush1.bf16.msra.mxu0 0
        %1265 = vmatprep.subr.bf16.mxu0 0
        %1266 = vmatpush1.bf16.msra.mxu0 0
        %1267 = vmatprep.subr.bf16.mxu0 0
        %1268 = vmatpush1.bf16.msra.mxu0 0
        %1269 = vmatprep.subr.bf16.mxu0 0
        %1270 = vmatpush1.bf16.msra.mxu0 0
        %1271 = vmatprep.subr.bf16.mxu0 0
        %1272 = vmatpush1.bf16.msra.mxu0 0
        %1273 = vmatprep.subr.bf16.mxu0 0
        %1274 = vmatpush1.bf16.msra.mxu0 0
        %1275 = vmatprep.subr.bf16.mxu0 0
        %1276 = vmatpush1.bf16.msra.mxu0 0
        %1277 = vmatprep.subr.bf16.mxu0 0
        %1278 = vmatpush1.bf16.msra.mxu0 0
        %1279 = vmatprep.mubr.bf16.mxu0 0
        %1280 = vmatmul.mubr.bf16.gmra.mrb[0].mxu0 %v1242
        %v1281 = vpop.f32.mrb[0].mxu0
        %v1282 = vadd.f32 %v1019, %v1281
        %v1283 = vpop.f32.mrb[0].mxu0
        %v1284 = vpop.f32.mrb[0].mxu0
        %v1285 = vadd.f32 %v1019, %v1284
        %v1286 = vpop.f32.mrb[0].mxu0
        %1287 = vmatprep.mubr.bf16.mxu0 0
        %1288 = vmatmul.mubr.bf16.gmra.mrb[0].mxu0 %v1245
        %v1289 = vpop.f32.mrb[0].mxu0
        %v1290 = vadd.f32 %v1019, %v1289
        %v1291 = vpop.f32.mrb[0].mxu0
        %v1292 = vpop.f32.mrb[0].mxu0
        %v1293 = vadd.f32 %v1019, %v1292
        %v1294 = vpop.f32.mrb[0].mxu0
        %1295 = vdwg.mxu0
        %v1296 = vxor.u32 %v1282, 2147483648
        %v1297 = vxor.u32 %v1285, 2147483648
        %v1298 = vxor.u32 %v1290, 2147483648
        %v1299 = vxor.u32 %v1293, 2147483648
        %v1300 = vmul.f32 %v1296, 1.442695
        %v1301 = vpow.pop %v1300
        %v1302 = vmul.f32 %v1297, 1.442695
        %v1303 = vpow.pop %v1302
        %v1304 = vmul.f32 %v1298, 1.442695
        %v1305 = vpow.pop %v1304
        %v1306 = vmul.f32 %v1299, 1.442695
        %v1307 = vpow.pop %v1306
        %v1308 = vadd.f32 %v1301, 1.0
        %v1309 = vadd.f32 %v1303, 1.0
        %v1310 = vadd.f32 %v1305, 1.0
        %v1311 = vadd.f32 %v1307, 1.0
        %v1312 = vrcp.pop %v1308
        %v1313 = vmul.f32 1.0, %v1312
        %v1314 = vrcp.pop %v1309
        %v1315 = vmul.f32 1.0, %v1314
        %v1316 = vrcp.pop %v1310
        %v1317 = vmul.f32 1.0, %v1316
        %v1318 = vrcp.pop %v1311
        %v1319 = vmul.f32 1.0, %v1318
        %1324 = vrot.lane.b32.xlu0 %v1313, 96
        %v1325 = vpop.permute.xlu0 %1324
        %1326 = vrot.lane.b32.xlu0 %v1315, 96
        %v1327 = vpop.permute.xlu0 %1326
        %1328 = vrot.lane.b32.xlu0 %v1317, 96
        %v1329 = vpop.permute.xlu0 %1328
        %1330 = vrot.lane.b32.xlu0 %v1319, 96
        %v1331 = vpop.permute.xlu0 %1330
        %v1336 = vmul.f32 %v1282, %v1325
        %v1337 = vmul.f32 %v1285, %v1327
        %v1338 = vmul.f32 %v1290, %v1329
        %v1339 = vmul.f32 %v1293, %v1331
        %v1342 = vunpack.c.l.b16 %v872
        %v1343 = vunpack.c.l.b16 %v873
        %v1344 = vpack.c.b16 %v1343, %v1342
        %v1347 = vunpack.c.l.b16 %v884
        %v1348 = vunpack.c.l.b16 %v885
        %v1349 = vpack.c.b16 %v1348, %v1347
        %v1352 = vsel %vm913, %v1344, 0
        %1354 = vmatprep.subr.bf16.mxu0 0
        %1355 = vmatpush1.bf16.msra.mxu0 %v1349
        %1356 = vmatprep.subr.bf16.mxu0 0
        %1357 = vmatpush1.bf16.msra.mxu0 0
        %1358 = vmatprep.subr.bf16.mxu0 0
        %1359 = vmatpush1.bf16.msra.mxu0 0
        %1360 = vmatprep.subr.bf16.mxu0 0
        %1361 = vmatpush1.bf16.msra.mxu0 0
        %1362 = vmatprep.subr.bf16.mxu0 0
        %1363 = vmatpush1.bf16.msra.mxu0 0
        %1364 = vmatprep.subr.bf16.mxu0 0
        %1365 = vmatpush1.bf16.msra.mxu0 0
        %1366 = vmatprep.subr.bf16.mxu0 0
        %1367 = vmatpush1.bf16.msra.mxu0 0
        %1368 = vmatprep.subr.bf16.mxu0 0
        %1369 = vmatpush1.bf16.msra.mxu0 0
        %1370 = vmatprep.subr.bf16.mxu0 0
        %1371 = vmatpush1.bf16.msra.mxu0 0
        %1372 = vmatprep.subr.bf16.mxu0 0
        %1373 = vmatpush1.bf16.msra.mxu0 0
        %1374 = vmatprep.subr.bf16.mxu0 0
        %1375 = vmatpush1.bf16.msra.mxu0 0
        %1376 = vmatprep.subr.bf16.mxu0 0
        %1377 = vmatpush1.bf16.msra.mxu0 0
        %1378 = vmatprep.subr.bf16.mxu0 0
        %1379 = vmatpush1.bf16.msra.mxu0 0
        %1380 = vmatprep.subr.bf16.mxu0 0
        %1381 = vmatpush1.bf16.msra.mxu0 0
        %1382 = vmatprep.subr.bf16.mxu0 0
        %1383 = vmatpush1.bf16.msra.mxu0 0
        %1384 = vmatprep.subr.bf16.mxu0 0
        %1385 = vmatpush1.bf16.msra.mxu0 0
        %1386 = vmatprep.mubr.bf16.mxu0 0
        %1387 = vmatmul.mubr.bf16.gmra.mrb[0].mxu0 %v1352
        %v1388 = vpop.f32.mrb[0].mxu0
        %v1389 = vadd.f32 %v894, %v1388
        %v1390 = vpop.f32.mrb[0].mxu0
        %v1391 = vpop.f32.mrb[0].mxu0
        %v1392 = vadd.f32 %v895, %v1391
        %v1393 = vpop.f32.mrb[0].mxu0
        %1394 = vdwg.mxu0
        %v1397 = vunpack.c.l.b16 %v874
        %v1398 = vunpack.c.l.b16 %v875
        %v1399 = vpack.c.b16 %v1398, %v1397
        %v1402 = vunpack.c.l.b16 %v886
        %v1403 = vunpack.c.l.b16 %v887
        %v1404 = vpack.c.b16 %v1403, %v1402
        %v1407 = vsel %vm913, %v1399, 0
        %1409 = vmatprep.subr.bf16.mxu0 0
        %1410 = vmatpush1.bf16.msra.mxu0 %v1404
        %1411 = vmatprep.subr.bf16.mxu0 0
        %1412 = vmatpush1.bf16.msra.mxu0 0
        %1413 = vmatprep.subr.bf16.mxu0 0
        %1414 = vmatpush1.bf16.msra.mxu0 0
        %1415 = vmatprep.subr.bf16.mxu0 0
        %1416 = vmatpush1.bf16.msra.mxu0 0
        %1417 = vmatprep.subr.bf16.mxu0 0
        %1418 = vmatpush1.bf16.msra.mxu0 0
        %1419 = vmatprep.subr.bf16.mxu0 0
        %1420 = vmatpush1.bf16.msra.mxu0 0
        %1421 = vmatprep.subr.bf16.mxu0 0
        %1422 = vmatpush1.bf16.msra.mxu0 0
        %1423 = vmatprep.subr.bf16.mxu0 0
        %1424 = vmatpush1.bf16.msra.mxu0 0
        %1425 = vmatprep.subr.bf16.mxu0 0
        %1426 = vmatpush1.bf16.msra.mxu0 0
        %1427 = vmatprep.subr.bf16.mxu0 0
        %1428 = vmatpush1.bf16.msra.mxu0 0
        %1429 = vmatprep.subr.bf16.mxu0 0
        %1430 = vmatpush1.bf16.msra.mxu0 0
        %1431 = vmatprep.subr.bf16.mxu0 0
        %1432 = vmatpush1.bf16.msra.mxu0 0
        %1433 = vmatprep.subr.bf16.mxu0 0
        %1434 = vmatpush1.bf16.msra.mxu0 0
        %1435 = vmatprep.subr.bf16.mxu0 0
        %1436 = vmatpush1.bf16.msra.mxu0 0
        %1437 = vmatprep.subr.bf16.mxu0 0
        %1438 = vmatpush1.bf16.msra.mxu0 0
        %1439 = vmatprep.subr.bf16.mxu0 0
        %1440 = vmatpush1.bf16.msra.mxu0 0
        %1441 = vmatprep.mubr.bf16.mxu0 0
        %1442 = vmatmul.mubr.bf16.gmra.mrb[0].mxu0 %v1407
        %v1443 = vpop.f32.mrb[0].mxu0
        %v1444 = vadd.f32 %v896, %v1443
        %v1445 = vpop.f32.mrb[0].mxu0
        %v1446 = vpop.f32.mrb[0].mxu0
        %v1447 = vadd.f32 %v897, %v1446
        %v1448 = vpop.f32.mrb[0].mxu0
        %1449 = vdwg.mxu0
        %v1450 = vpack.c.bf16 %v1392, %v1389
        %v1451 = vpack.c.bf16 %v1447, %v1444
        %v1453 = vsel %vm1021, %v1450, 0
        %v1456 = vsel %vm1021, %v1451, 0
        %1458 = vmatprep.subr.bf16.mxu0 0
        %1459 = vmatpush1.bf16.msra.mxu0 %v1030
        %1460 = vmatprep.subr.bf16.mxu0 0
        %1461 = vmatpush1.bf16.msra.mxu0 0
        %1462 = vmatprep.subr.bf16.mxu0 0
        %1463 = vmatpush1.bf16.msra.mxu0 0
        %1464 = vmatprep.subr.bf16.mxu0 0
        %1465 = vmatpush1.bf16.msra.mxu0 0
        %1466 = vmatprep.subr.bf16.mxu0 0
        %1467 = vmatpush1.bf16.msra.mxu0 0
        %1468 = vmatprep.subr.bf16.mxu0 0
        %1469 = vmatpush1.bf16.msra.mxu0 0
        %1470 = vmatprep.subr.bf16.mxu0 0
        %1471 = vmatpush1.bf16.msra.mxu0 0
        %1472 = vmatprep.subr.bf16.mxu0 0
        %1473 = vmatpush1.bf16.msra.mxu0 0
        %1474 = vmatprep.subr.bf16.mxu0 0
        %1475 = vmatpush1.bf16.msra.mxu0 0
        %1476 = vmatprep.subr.bf16.mxu0 0
        %1477 = vmatpush1.bf16.msra.mxu0 0
        %1478 = vmatprep.subr.bf16.mxu0 0
        %1479 = vmatpush1.bf16.msra.mxu0 0
        %1480 = vmatprep.subr.bf16.mxu0 0
        %1481 = vmatpush1.bf16.msra.mxu0 0
        %1482 = vmatprep.subr.bf16.mxu0 0
        %1483 = vmatpush1.bf16.msra.mxu0 0
        %1484 = vmatprep.subr.bf16.mxu0 0
        %1485 = vmatpush1.bf16.msra.mxu0 0
        %1486 = vmatprep.subr.bf16.mxu0 0
        %1487 = vmatpush1.bf16.msra.mxu0 0
        %1488 = vmatprep.subr.bf16.mxu0 0
        %1489 = vmatpush1.bf16.msra.mxu0 0
        %1490 = vmatprep.mubr.bf16.mxu0 0
        %1491 = vmatmul.mubr.bf16.gmra.mrb[0].mxu0 %v1453
        %v1492 = vpop.f32.mrb[0].mxu0
        %v1493 = vadd.f32 %v1019, %v1492
        %v1494 = vpop.f32.mrb[0].mxu0
        %v1495 = vpop.f32.mrb[0].mxu0
        %v1496 = vadd.f32 %v1019, %v1495
        %v1497 = vpop.f32.mrb[0].mxu0
        %1498 = vmatprep.mubr.bf16.mxu0 0
        %1499 = vmatmul.mubr.bf16.gmra.mrb[0].mxu0 %v1456
        %v1500 = vpop.f32.mrb[0].mxu0
        %v1501 = vadd.f32 %v1019, %v1500
        %v1502 = vpop.f32.mrb[0].mxu0
        %v1503 = vpop.f32.mrb[0].mxu0
        %v1504 = vadd.f32 %v1019, %v1503
        %v1505 = vpop.f32.mrb[0].mxu0
        %1506 = vdwg.mxu0
        %v1507 = vxor.u32 %v1493, 2147483648
        %v1508 = vxor.u32 %v1496, 2147483648
        %v1509 = vxor.u32 %v1501, 2147483648
        %v1510 = vxor.u32 %v1504, 2147483648
        %v1511 = vmul.f32 %v1507, 1.442695
        %v1512 = vpow.pop %v1511
        %v1513 = vmul.f32 %v1508, 1.442695
        %v1514 = vpow.pop %v1513
        %v1515 = vmul.f32 %v1509, 1.442695
        %v1516 = vpow.pop %v1515
        %v1517 = vmul.f32 %v1510, 1.442695
        %v1518 = vpow.pop %v1517
        %v1519 = vadd.f32 %v1512, 1.0
        %v1520 = vadd.f32 %v1514, 1.0
        %v1521 = vadd.f32 %v1516, 1.0
        %v1522 = vadd.f32 %v1518, 1.0
        %v1523 = vrcp.pop %v1519
        %v1524 = vmul.f32 1.0, %v1523
        %v1525 = vrcp.pop %v1520
        %v1526 = vmul.f32 1.0, %v1525
        %v1527 = vrcp.pop %v1521
        %v1528 = vmul.f32 1.0, %v1527
        %v1529 = vrcp.pop %v1522
        %v1530 = vmul.f32 1.0, %v1529
        %1535 = vrot.lane.b32.xlu0 %v1524, 96
        %v1536 = vpop.permute.xlu0 %1535
        %1537 = vrot.lane.b32.xlu0 %v1526, 96
        %v1538 = vpop.permute.xlu0 %1537
        %1539 = vrot.lane.b32.xlu0 %v1528, 96
        %v1540 = vpop.permute.xlu0 %1539
        %1541 = vrot.lane.b32.xlu0 %v1530, 96
        %v1542 = vpop.permute.xlu0 %1541
        %v1547 = vmul.f32 %v1493, %v1536
        %v1548 = vmul.f32 %v1496, %v1538
        %v1549 = vmul.f32 %v1501, %v1540
        %v1550 = vmul.f32 %v1504, %v1542
        %v1551 = vld [vmem:[%s859] sm:$0xf]
        %v1552 = vld [vmem:[%s859 + $0x4] sm:$0xf]
        %v1553 = vld [vmem:[%s859 + $0x8] sm:$0xf]
        %v1554 = vld [vmem:[%s859 + $0xc] sm:$0xf]
        %v1555 = vld [vmem:[%s862] sm:$0x1]
        %v1556 = vpack.c.bf16 %v1122, %v1121
        %v1557 = vpack.c.bf16 %v1124, %v1123
        %v1558 = vpack.c.bf16 %v1337, %v1336
        %v1559 = vpack.c.bf16 %v1339, %v1338
        %v1560 = vpack.c.bf16 %v1548, %v1547
        %v1561 = vpack.c.bf16 %v1550, %v1549
        %v1562 = vunpack.c.l.bf16 %v1556
        %v1563 = vunpack.c.h.bf16 %v1556
        %v1564 = vunpack.c.l.bf16 %v1557
        %v1565 = vunpack.c.h.bf16 %v1557
        %v1566 = vunpack.c.l.bf16 %v1560
        %v1567 = vunpack.c.h.bf16 %v1560
        %v1568 = vunpack.c.l.bf16 %v1561
        %v1569 = vunpack.c.h.bf16 %v1561
        %1570 = vmatprep.subr.bf16.mxu0 0
        %1571 = vmatpush1.bf16.msra.mxu0 %v1558
        %1572 = vmatprep.subr.bf16.mxu0 0
        %1573 = vmatpush1.bf16.msra.mxu0 0
        %1574 = vmatprep.subr.bf16.mxu0 0
        %1575 = vmatpush1.bf16.msra.mxu0 0
        %1576 = vmatprep.subr.bf16.mxu0 0
        %1577 = vmatpush1.bf16.msra.mxu0 0
        %1578 = vmatprep.subr.bf16.mxu0 0
        %1579 = vmatpush1.bf16.msra.mxu0 0
        %1580 = vmatprep.subr.bf16.mxu0 0
        %1581 = vmatpush1.bf16.msra.mxu0 0
        %1582 = vmatprep.subr.bf16.mxu0 0
        %1583 = vmatpush1.bf16.msra.mxu0 0
        %1584 = vmatprep.subr.bf16.mxu0 0
        %1585 = vmatpush1.bf16.msra.mxu0 0
        %1586 = vmatprep.subr.bf16.mxu0 0
        %1587 = vmatpush1.bf16.msra.mxu0 0
        %1588 = vmatprep.subr.bf16.mxu0 0
        %1589 = vmatpush1.bf16.msra.mxu0 0
        %1590 = vmatprep.subr.bf16.mxu0 0
        %1591 = vmatpush1.bf16.msra.mxu0 0
        %1592 = vmatprep.subr.bf16.mxu0 0
        %1593 = vmatpush1.bf16.msra.mxu0 0
        %1594 = vmatprep.subr.bf16.mxu0 0
        %1595 = vmatpush1.bf16.msra.mxu0 0
        %1596 = vmatprep.subr.bf16.mxu0 0
        %1597 = vmatpush1.bf16.msra.mxu0 0
        %1598 = vmatprep.subr.bf16.mxu0 0
        %1599 = vmatpush1.bf16.msra.mxu0 0
        %1600 = vmatprep.subr.bf16.mxu0 0
        %1601 = vmatpush1.bf16.msra.mxu0 0
        %1602 = vmatprep.mubr.bf16.mxu0 0
        %1603 = vmatmul.mubr.bf16.gmra.mrb[0].mxu0 %v1137
        %v1604 = vpop.f32.mrb[0].mxu0
        %v1605 = vadd.f32 %v1562, %v1604
        %v1606 = vpop.f32.mrb[0].mxu0
        %v1607 = vpop.f32.mrb[0].mxu0
        %v1608 = vadd.f32 %v1563, %v1607
        %v1609 = vpop.f32.mrb[0].mxu0
        %1610 = vdwg.mxu0
        %1611 = vmatprep.subr.bf16.mxu0 0
        %1612 = vmatpush1.bf16.msra.mxu0 %v1559
        %1613 = vmatprep.subr.bf16.mxu0 0
        %1614 = vmatpush1.bf16.msra.mxu0 0
        %1615 = vmatprep.subr.bf16.mxu0 0
        %1616 = vmatpush1.bf16.msra.mxu0 0
        %1617 = vmatprep.subr.bf16.mxu0 0
        %1618 = vmatpush1.bf16.msra.mxu0 0
        %1619 = vmatprep.subr.bf16.mxu0 0
        %1620 = vmatpush1.bf16.msra.mxu0 0
        %1621 = vmatprep.subr.bf16.mxu0 0
        %1622 = vmatpush1.bf16.msra.mxu0 0
        %1623 = vmatprep.subr.bf16.mxu0 0
        %1624 = vmatpush1.bf16.msra.mxu0 0
        %1625 = vmatprep.subr.bf16.mxu0 0
        %1626 = vmatpush1.bf16.msra.mxu0 0
        %1627 = vmatprep.subr.bf16.mxu0 0
        %1628 = vmatpush1.bf16.msra.mxu0 0
        %1629 = vmatprep.subr.bf16.mxu0 0
        %1630 = vmatpush1.bf16.msra.mxu0 0
        %1631 = vmatprep.subr.bf16.mxu0 0
        %1632 = vmatpush1.bf16.msra.mxu0 0
        %1633 = vmatprep.subr.bf16.mxu0 0
        %1634 = vmatpush1.bf16.msra.mxu0 0
        %1635 = vmatprep.subr.bf16.mxu0 0
        %1636 = vmatpush1.bf16.msra.mxu0 0
        %1637 = vmatprep.subr.bf16.mxu0 0
        %1638 = vmatpush1.bf16.msra.mxu0 0
        %1639 = vmatprep.subr.bf16.mxu0 0
        %1640 = vmatpush1.bf16.msra.mxu0 0
        %1641 = vmatprep.subr.bf16.mxu0 0
        %1642 = vmatpush1.bf16.msra.mxu0 0
        %1643 = vmatprep.mubr.bf16.mxu0 0
        %1644 = vmatmul.mubr.bf16.gmra.mrb[0].mxu0 %v1192
        %v1645 = vpop.f32.mrb[0].mxu0
        %v1646 = vadd.f32 %v1564, %v1645
        %v1647 = vpop.f32.mrb[0].mxu0
        %v1648 = vpop.f32.mrb[0].mxu0
        %v1649 = vadd.f32 %v1565, %v1648
        %v1650 = vpop.f32.mrb[0].mxu0
        %1651 = vdwg.mxu0
        %v1652 = vadd.f32 %v1605, %v1566
        %v1653 = vadd.f32 %v1608, %v1567
        %v1654 = vadd.f32 %v1646, %v1568
        %v1655 = vadd.f32 %v1649, %v1569
        %v1656 = vpack.c.bf16 %v1653, %v1652
        %v1657 = vpack.c.bf16 %v1655, %v1654
        %v1659 = vlaneseq
        %v1660 = vshrl.u32 %v1659, 7
        %v1661 = vsub.s32 0, %v1660
        %v1662 = vrot.slane %v1555, %v1661
        %v1668 = vunpack.c.l.b16 %v1551
        %v1669 = vunpack.c.l.b16 %v1552
        %v1670 = vunpack.c.l.b16 %v1553
        %v1671 = vunpack.c.l.b16 %v1554
        %v1672 = vpack.c.b16 %v1669, %v1668
        %v1673 = vpack.c.b16 %v1671, %v1670
        %vm1676 = vcmask 261120
        %v1678 = vsel %vm1676, %v1656, 0
        %v1681 = vsel %vm1676, %v1657, 0
        %1683 = vmatprep.subr.bf16.mxu0 0
        %1684 = vmatpush1.bf16.msra.mxu0 %v1672
        %1685 = vmatprep.subr.bf16.mxu0 0
        %1686 = vmatpush1.bf16.msra.mxu0 %v1673
        %1687 = vmatprep.subr.bf16.mxu0 0
        %1688 = vmatpush1.bf16.msra.mxu0 0
        %1689 = vmatprep.subr.bf16.mxu0 0
        %1690 = vmatpush1.bf16.msra.mxu0 0
        %1691 = vmatprep.subr.bf16.mxu0 0
        %1692 = vmatpush1.bf16.msra.mxu0 0
        %1693 = vmatprep.subr.bf16.mxu0 0
        %1694 = vmatpush1.bf16.msra.mxu0 0
        %1695 = vmatprep.subr.bf16.mxu0 0
        %1696 = vmatpush1.bf16.msra.mxu0 0
        %1697 = vmatprep.subr.bf16.mxu0 0
        %1698 = vmatpush1.bf16.msra.mxu0 0
        %1699 = vmatprep.subr.bf16.mxu0 0
        %1700 = vmatpush1.bf16.msra.mxu0 0
        %1701 = vmatprep.subr.bf16.mxu0 0
        %1702 = vmatpush1.bf16.msra.mxu0 0
        %1703 = vmatprep.subr.bf16.mxu0 0
        %1704 = vmatpush1.bf16.msra.mxu0 0
        %1705 = vmatprep.subr.bf16.mxu0 0
        %1706 = vmatpush1.bf16.msra.mxu0 0
        %1707 = vmatprep.subr.bf16.mxu0 0
        %1708 = vmatpush1.bf16.msra.mxu0 0
        %1709 = vmatprep.subr.bf16.mxu0 0
        %1710 = vmatpush1.bf16.msra.mxu0 0
        %1711 = vmatprep.subr.bf16.mxu0 0
        %1712 = vmatpush1.bf16.msra.mxu0 0
        %1713 = vmatprep.subr.bf16.mxu0 0
        %1714 = vmatpush1.bf16.msra.mxu0 0
        %1715 = vmatprep.mubr.bf16.mxu0 0
        %1716 = vmatmul.mubr.bf16.gmra.mrb[0].mxu0 %v1678
        %v1717 = vpop.f32.mrb[0].mxu0
        %v1718 = vadd.f32 %v1662, %v1717
        %v1719 = vpop.f32.mrb[0].mxu0
        %v1720 = vpop.f32.mrb[0].mxu0
        %v1721 = vadd.f32 %v1662, %v1720
        %v1722 = vpop.f32.mrb[0].mxu0
        %1723 = vmatprep.mubr.bf16.mxu0 0
        %1724 = vmatmul.mubr.bf16.gmra.mrb[0].mxu0 %v1681
        %v1725 = vpop.f32.mrb[0].mxu0
        %v1726 = vadd.f32 %v1662, %v1725
        %v1727 = vpop.f32.mrb[0].mxu0
        %v1728 = vpop.f32.mrb[0].mxu0
        %v1729 = vadd.f32 %v1662, %v1728
        %v1730 = vpop.f32.mrb[0].mxu0
        %1731 = vdwg.mxu0
        %v1732 = vxor.u32 %v1718, 2147483648
        %v1733 = vxor.u32 %v1721, 2147483648
        %v1734 = vxor.u32 %v1726, 2147483648
        %v1735 = vxor.u32 %v1729, 2147483648
        %v1736 = vmul.f32 %v1732, 1.442695
        %v1737 = vpow.pop %v1736
        %v1738 = vmul.f32 %v1733, 1.442695
        %v1739 = vpow.pop %v1738
        %v1740 = vmul.f32 %v1734, 1.442695
        %v1741 = vpow.pop %v1740
        %v1742 = vmul.f32 %v1735, 1.442695
        %v1743 = vpow.pop %v1742
        %v1744 = vadd.f32 %v1737, 1.0
        %v1745 = vadd.f32 %v1739, 1.0
        %v1746 = vadd.f32 %v1741, 1.0
        %v1747 = vadd.f32 %v1743, 1.0
        %v1748 = vrcp.pop %v1744
        %v1749 = vmul.f32 1.0, %v1748
        %v1750 = vrcp.pop %v1745
        %v1751 = vmul.f32 1.0, %v1750
        %v1752 = vrcp.pop %v1746
        %v1753 = vmul.f32 1.0, %v1752
        %v1754 = vrcp.pop %v1747
        %v1755 = vmul.f32 1.0, %v1754
        %1760 = vrot.lane.b32.xlu0 %v1749, 96
        %v1761 = vpop.permute.xlu0 %1760
        %1762 = vrot.lane.b32.xlu0 %v1751, 96
        %v1763 = vpop.permute.xlu0 %1762
        %1764 = vrot.lane.b32.xlu0 %v1753, 96
        %v1765 = vpop.permute.xlu0 %1764
        %1766 = vrot.lane.b32.xlu0 %v1755, 96
        %v1767 = vpop.permute.xlu0 %1766
        %v1772 = vmul.f32 %v1718, %v1761
        %v1773 = vmul.f32 %v1721, %v1763
        %v1774 = vmul.f32 %v1726, %v1765
        %v1775 = vmul.f32 %v1729, %v1767
        %v1776 = vmax.f32 %v1336, %v1772
        %v1777 = vmax.f32 %v1337, %v1773
        %v1778 = vmax.f32 %v1338, %v1774
        %v1779 = vmax.f32 %v1339, %v1775
        %1780 = vst.msk [vmem:[%s843] sm:$0xff] %vm1676, %v1776
        %1781 = vst.msk [vmem:[%s843 + $0x8] sm:$0xff] %vm1676, %v1777
        %1782 = vst.msk [vmem:[%s843 + $0x10] sm:$0xff] %vm1676, %v1778
        %1783 = vst.msk [vmem:[%s843 + $0x18] sm:$0xff] %vm1676, %v1779
        %s1784 = sand.u32 %s300, 1
        %s1785 = scalar_lea.sflag [#allocation9], %s1784
        %s1786 = sand.u32 %s300, 1
        %s1787 = smul.addr %s1786, 32
        %s1788 = scalar_lea.vmem [#allocation8], %s1787
        // Predicated region
        $region307: #{tpu_custom_call.1} parent=281 // pred_check
          %p1789 = pneg %p310
        $region308: #{tpu_custom_call.1} parent=281 // pred_check_branch
          %1791 = sbr.rel (%p1789) target = $region310
        $region309: #{tpu_custom_call.1} parent=281 // pred_region
          %s1793 = ssub.s32 512, 512
          %1794 = vsyncadd %s1785, %s1793
          %s1795 = smul.addr %s24, 4
          %s1796 = smul.addr %s1795, 128
          %s1797 = scalar_lea.hbm %s10, %s1796
          %s1798 = sshll.u32 %s1788, 4
          %s1799 = int_to_ptr.vmem [resolvable:$true] %s1798
          %1804 = dma.vmem_to_hbm [thread:$0]  %s1799, 512, %s1797, %s1785, 128, 128, 8
        $region310: #{tpu_custom_call.1} parent=281 // pred_fallthru
          _
      $region282: #{tpu_custom_call.1} parent=5 // pred_fallthru
        _
      %p1805 = scmp.le.s32.totalorder 2, %s19
      // Predicated region
      $region311: #{tpu_custom_call.1} parent=5 // pred_check
        %p1806 = pneg %p1805
      $region312: #{tpu_custom_call.1} parent=5 // pred_check_branch
        %1808 = sbr.rel (%p1806) target = $region314
      $region313: #{tpu_custom_call.1} parent=5 // pred_region
        %s1809 = ssub.s32 %s19, 2
        // Predicated region
        $region315: #{tpu_custom_call.1} parent=313 // pred_check
          %p1810 = pneg %p316
        $region316: #{tpu_custom_call.1} parent=313 // pred_check_branch
          %1812 = sbr.rel (%p1810) target = $region318
        $region317: #{tpu_custom_call.1} parent=313 // pred_region
          %s1813 = sand.u32 %s301, 1
          %s1814 = scalar_lea.sflag [#allocation9], %s1813
          %s1815 = sand.u32 %s301, 1
          %s1816 = smul.addr %s1815, 32
          %s1817 = scalar_lea.vmem [#allocation8], %s1816
          %1818 = dma.done %s1814, 512
        $region318: #{tpu_custom_call.1} parent=313 // pred_fallthru
          _
      $region314: #{tpu_custom_call.1} parent=5 // pred_fallthru
        _
    $region6: #{tpu_custom_call.1} parent=1 // loop_footer
      %s23 = sadd.s32 1, %s19
    $region7: #{tpu_custom_call.1} parent=1 // loop_footer_branch
      %18 = sbr.rel target = $region3
    $region8: #{tpu_custom_call.1} parent=1 // loop_exit
      _
    %1819 = vsyncpa [#allocation9], 1
    %s1820 = scalar_lea.sflag [#allocation9], 1
    %1821 = vsyncpa %s1820, 1

</llo_original>
